<compile_context>
chip_gen: v7x
topology: tpu7x:2x2x1
jax: 0.10.0
libtpu: 0.0.40
codegen_flags: <defaults>
</compile_context>

<pallas_src>
import numpy as np
import jax
import jax.numpy as jnp
from jax.experimental import pallas as pl
from jax.experimental.pallas import tpu as pltpu


def _split_channels(channels, num_groups):
    split = [channels // num_groups for _ in range(num_groups)]
    split[0] += channels - sum(split)
    return split


# ----------------------------------------------------------------------------
# Fused kernel: (block-diag 1x1 conv + folded BN + ReLU) -> unified depthwise.
# One grid step covers `nb` samples (static in-kernel loop).
# ----------------------------------------------------------------------------
def _make_msdc_kernel(nb, kmax, W, S_pad):
    pad = (kmax - 1) // 2
    taps = []
    for dy in range(kmax):
        for dx in range(kmax):
            taps.append((dy * kmax + dx, (dy - pad) * W + (dx - pad)))
    t_center = pad * kmax + pad

    def kernel(x_ref, w1_ref, s2_ref, coef_ref, o_ref):
        w1 = w1_ref[...]                      # (C, C) block-diag, bias+BN folded
        s2 = s2_ref[...]                      # (C, 1) per-channel shift
        for n in range(nb):                   # static unroll over the batch block
            x = x_ref[n]                      # (C, S_pad), lane-dense
            y = jnp.dot(w1, x, preferred_element_type=jnp.float32)
            y = jnp.maximum(y + s2, 0.0)      # fused BN + ReLU
            # Unified kmax x kmax depthwise conv: each tap is a lane roll of the
            # in-register activation times a pre-folded (mask * weight) coef.
            acc = y * coef_ref[t_center]      # center tap: no roll, no add
            for t, off in taps:
                if off == 0:
                    continue
                shifted = pltpu.roll(y, (-off) % S_pad, 1)   # XLU slot
                acc = acc + shifted * coef_ref[t]            # 2 VPU ops / tap
            o_ref[n] = acc.astype(o_ref.dtype)

    return kernel


def _build_tap_coef(dw_flat, H, W, kmax, S_pad):
    """(KK, C, S_pad) coefficients: per-tap boundary mask folded with the
    per-channel depthwise weight (host-built). Pad lanes are zero."""
    pad = (kmax - 1) // 2
    dw_np = np.asarray(dw_flat, np.float32)               # (C, KK)
    C = dw_np.shape[0]
    hh, ww = np.meshgrid(np.arange(H), np.arange(W), indexing="ij")
    coef = np.zeros((kmax * kmax, C, S_pad), np.float32)
    for dy in range(kmax):
        for dx in range(kmax):
            t = dy * kmax + dx
            hs, ws = hh + dy - pad, ww + dx - pad
            valid = ((hs >= 0) & (hs < H) & (ws >= 0) & (ws < W))
            coef[t, :, :H * W] = dw_np[:, t:t + 1] * valid.reshape(-1)[None, :]
    return jnp.asarray(coef)


def msdc_forward(x_nchw, fused, kmax, *, batch_block=None,
                 matmul_dtype=jnp.float32):
    """MSDC forward. Input/output are NCHW to match the PyTorch module."""
    N, C, H, W = x_nchw.shape
    S = H * W
    S_pad = ((S + 127) // 128) * 128          # lane-dense last dim
    KK = kmax * kmax

    x_flat = x_nchw.reshape(N, C, S).astype(matmul_dtype)
    if S_pad != S:
        x_flat = jnp.pad(x_flat, ((0, 0), (0, 0), (0, S_pad - S)))

    if batch_block is None:
        # Whole batch per grid step (per-step overhead dominates at small
        # shapes); fall back to a divisor of N if the block would get large.
        # TODO(synk): on v7x prefer a >=2-way parallel grid once there is
        # enough work to split across the two TensorCores.
        budget = 4 << 20
        batch_block = 1
        for d in range(N, 0, -1):
            if N % d == 0 and d * C * S_pad * 4 <= budget:
                batch_block = d
                break
    assert N % batch_block == 0, (N, batch_block)

    coef = _build_tap_coef(fused["dw"], H, W, kmax, S_pad)
    w1 = fused["w1"].astype(matmul_dtype)

    out_flat = pl.pallas_call(
        _make_msdc_kernel(batch_block, kmax, W, S_pad),
        out_shape=jax.ShapeDtypeStruct((N, C, S_pad), jnp.float32),
        grid=(N // batch_block,),
        in_specs=[
            pl.BlockSpec((batch_block, C, S_pad), lambda g: (g, 0, 0)),   # x
            pl.BlockSpec((C, C), lambda g: (0, 0)),          # fused 1x1 weights
            pl.BlockSpec((C, 1), lambda g: (0, 0)),          # per-channel shift
            pl.BlockSpec((KK, C, S_pad), lambda g: (0, 0, 0)),  # tap coeffs
        ],
        out_specs=pl.BlockSpec((batch_block, C, S_pad), lambda g: (g, 0, 0)),
        compiler_params=pltpu.CompilerParams(
            dimension_semantics=("parallel",)),
    )(x_flat, w1, fused["shift"], coef)
    return out_flat[:, :, :S].reshape(N, C, H, W)


# ----------------------------------------------------------------------------
# Parameters: raw (torch-shaped) -> fused (block-diag weights, folded BN,
# kxk depthwise filters zero-padded to kmax x kmax).
# ----------------------------------------------------------------------------
def init_raw_params(key, sp, kernel_sizes):
    """Deterministic synthetic parameters matching nn.Module shapes."""
    params = []
    for c, k in zip(sp, kernel_sizes):
        key, *subs = jax.random.split(key, 8)
        params.append(dict(
            w1=0.3 * jax.random.normal(subs[0], (c, c), jnp.float32),       # (Cout,Cin)
            b1=0.1 * jax.random.normal(subs[1], (c,), jnp.float32),
            gamma=1.0 + 0.1 * jax.random.normal(subs[2], (c,), jnp.float32),
            beta=0.1 * jax.random.normal(subs[3], (c,), jnp.float32),
            rmean=0.1 * jax.random.normal(subs[4], (c,), jnp.float32),
            rvar=1.0 + 0.1 * jnp.abs(jax.random.normal(subs[5], (c,), jnp.float32)),
            dw=0.2 * jax.random.normal(subs[6], (c, 1, k, k), jnp.float32),  # depthwise
        ))
    return params


def build_fused_params(raw_params, sp, kernel_sizes, eps=1e-5):
    """Fold bias+BN into the 1x1 weights, block-diag over groups, pad dw to kmax."""
    ctot = sum(sp)
    kmax = max(kernel_sizes)
    kk = kmax * kmax
    w1f = jnp.zeros((ctot, ctot), jnp.float32)
    shift2 = jnp.zeros((ctot,), jnp.float32)
    dwf = jnp.zeros((ctot, kk), jnp.float32)
    c0 = 0
    for p, k, c in zip(raw_params, kernel_sizes, sp):
        scale = p["gamma"] / jnp.sqrt(p["rvar"] + eps)
        w1f = w1f.at[c0:c0 + c, c0:c0 + c].set(p["w1"] * scale[:, None])
        shift2 = shift2.at[c0:c0 + c].set(
            p["b1"] * scale + p["beta"] - p["rmean"] * scale)
        off = (kmax - k) // 2                      # center kxk inside kmax x kmax
        dw_full = jnp.zeros((c, kmax, kmax), jnp.float32)
        dw_full = dw_full.at[:, off:off + k, off:off + k].set(p["dw"][:, 0])
        dwf = dwf.at[c0:c0 + c].set(dw_full.reshape(c, kk))
        c0 += c
    return dict(w1=w1f, shift=shift2.reshape(ctot, 1), dw=dwf)


# ----------------------------------------------------------------------------
# Pure-JAX reference of the original (unfused) module math, for verification.
# ----------------------------------------------------------------------------
def reference_forward(x_nchw, raw_params, sp, kernel_sizes, eps=1e-5):
    x = x_nchw.astype(jnp.float32)
    outs, c0 = [], 0
    for p, k, c in zip(raw_params, kernel_sizes, sp):
        xb = x[:, c0:c0 + c]
        c0 += c
        N, C, H, W = xb.shape
        pad = (k - 1) // 2
        y = jnp.einsum("oc,nchw->nohw", p["w1"], xb) + p["b1"][None, :, None, None]
        scale = p["gamma"] / jnp.sqrt(p["rvar"] + eps)
        y = y * scale[None, :, None, None] + \
            (p["beta"] - p["rmean"] * scale)[None, :, None, None]
        y = jnp.maximum(y, 0.0)
        yp = jnp.pad(y, ((0, 0), (0, 0), (pad, pad), (pad, pad)))
        dw = p["dw"][:, 0]                          # (C, k, k)
        out = jnp.zeros_like(y)
        for dy in range(k):
            for dx in range(k):
                out = out + yp[:, :, dy:dy + H, dx:dx + W] * \
                    dw[:, dy, dx][None, :, None, None]
        outs.append(out)
    return jnp.concatenate(outs, axis=1)


if __name__ == "__main__":
    # Config consistent with the module: channels=8, kernel_size=(3, 5) -> sp=[4, 4]
    channels = 8
    kernel_sizes = (3, 5)
    sp = _split_channels(channels, len(kernel_sizes))
    kmax = max(kernel_sizes)

    key = jax.random.PRNGKey(0)
    kx, kp = jax.random.split(key)
    x = jax.random.normal(kx, (2, channels, 16, 16), jnp.float32)   # NCHW

    raw = init_raw_params(kp, sp, kernel_sizes)
    fused = build_fused_params(raw, sp, kernel_sizes)

    out = msdc_forward(x, fused, kmax)
    out = jax.block_until_ready(out)

    ref = reference_forward(x, raw, sp, kernel_sizes)
    assert out.shape == x.shape, (out.shape, x.shape)
    assert jnp.allclose(out, ref, atol=1e-4, rtol=1e-4), "mismatch vs reference"

    print("KERNEL_OK")
</pallas_src>

<mosaic_0001>
module attributes {stable_mosaic.version = 11 : i64} {
  func.func @kernel(%arg0: i32, %arg1: memref<2x8x256xf32, #tpu.memory_space<vmem>>, %arg2: memref<8x8xf32, #tpu.memory_space<vmem>>, %arg3: memref<8x1xf32, #tpu.memory_space<vmem>>, %arg4: memref<25x8x256xf32, #tpu.memory_space<vmem>>, %arg5: memref<2x8x256xf32, #tpu.memory_space<vmem>>) attributes {dimension_semantics = [#tpu.dimension_semantics<parallel>], iteration_bounds = array<i64: 1>, scalar_prefetch = 0 : i64, scratch_operands = 0 : i64, tpu.core_type = #tpu.core_type<tc>, window_params = [{transform_indices = @transform_0, window_bounds = array<i64: 2, 8, 256>}, {pipeline_mode = #tpu.pipeline_mode<synchronous>, transform_indices = @transform_1, window_bounds = array<i64: 8, 8>}, {pipeline_mode = #tpu.pipeline_mode<synchronous>, transform_indices = @transform_2, window_bounds = array<i64: 8, 1>}, {pipeline_mode = #tpu.pipeline_mode<synchronous>, transform_indices = @transform_3, window_bounds = array<i64: 25, 8, 256>}, {transform_indices = @transform_4, window_bounds = array<i64: 2, 8, 256>}]} {
    %c0 = arith.constant 0 : index
    %c0_0 = arith.constant 0 : index
    %0 = vector.load %arg2[%c0, %c0_0] : memref<8x8xf32, #tpu.memory_space<vmem>>, vector<8x8xf32>
    %c0_1 = arith.constant 0 : index
    %c0_2 = arith.constant 0 : index
    %1 = vector.load %arg3[%c0_1, %c0_2] : memref<8x1xf32, #tpu.memory_space<vmem>>, vector<8x1xf32>
    %c0_3 = arith.constant 0 : index
    %c0_4 = arith.constant 0 : index
    %c0_5 = arith.constant 0 : index
    %2 = vector.load %arg1[%c0_3, %c0_4, %c0_5] : memref<2x8x256xf32, #tpu.memory_space<vmem>>, vector<1x8x256xf32>
    %3 = vector.shape_cast %2 : vector<1x8x256xf32> to vector<8x256xf32>
    %cst = arith.constant dense<0.000000e+00> : vector<8x256xf32>
    %4 = tpu.matmul %0, %3, %cst {dimension_numbers = #tpu.dot_dimension_numbers<[1], [0], [0], [1], [0, 0, 1, 1], [], []>} : vector<8x8xf32>, vector<8x256xf32>, vector<8x256xf32> -> vector<8x256xf32>
    %5 = vector.broadcast %1 : vector<8x1xf32> to vector<8x256xf32>
    %6 = arith.addf %4, %5 : vector<8x256xf32>
    %cst_6 = arith.constant 0.000000e+00 : f32
    %7 = vector.broadcast %cst_6 : f32 to vector<8x256xf32>
    %8 = arith.maximumf %6, %7 : vector<8x256xf32>
    %c12 = arith.constant 12 : index
    %c0_7 = arith.constant 0 : index
    %c0_8 = arith.constant 0 : index
    %9 = vector.load %arg4[%c12, %c0_7, %c0_8] : memref<25x8x256xf32, #tpu.memory_space<vmem>>, vector<1x8x256xf32>
    %10 = vector.shape_cast %9 : vector<1x8x256xf32> to vector<8x256xf32>
    %11 = arith.mulf %8, %10 : vector<8x256xf32>
    %c34_i32 = arith.constant 34 : i32
    %12 = tpu.dynamic_rotate %8 by %c34_i32 dim 1 : vector<8x256xf32>, i32 -> vector<8x256xf32>
    %c0_9 = arith.constant 0 : index
    %c0_10 = arith.constant 0 : index
    %c0_11 = arith.constant 0 : index
    %13 = vector.load %arg4[%c0_9, %c0_10, %c0_11] : memref<25x8x256xf32, #tpu.memory_space<vmem>>, vector<1x8x256xf32>
    %14 = vector.shape_cast %13 : vector<1x8x256xf32> to vector<8x256xf32>
    %15 = arith.mulf %12, %14 : vector<8x256xf32>
    %16 = arith.addf %11, %15 : vector<8x256xf32>
    %c33_i32 = arith.constant 33 : i32
    %17 = tpu.dynamic_rotate %8 by %c33_i32 dim 1 : vector<8x256xf32>, i32 -> vector<8x256xf32>
    %c1 = arith.constant 1 : index
    %c0_12 = arith.constant 0 : index
    %c0_13 = arith.constant 0 : index
    %18 = vector.load %arg4[%c1, %c0_12, %c0_13] : memref<25x8x256xf32, #tpu.memory_space<vmem>>, vector<1x8x256xf32>
    %19 = vector.shape_cast %18 : vector<1x8x256xf32> to vector<8x256xf32>
    %20 = arith.mulf %17, %19 : vector<8x256xf32>
    %21 = arith.addf %16, %20 : vector<8x256xf32>
    %c32_i32 = arith.constant 32 : i32
    %22 = tpu.dynamic_rotate %8 by %c32_i32 dim 1 : vector<8x256xf32>, i32 -> vector<8x256xf32>
    %c2 = arith.constant 2 : index
    %c0_14 = arith.constant 0 : index
    %c0_15 = arith.constant 0 : index
    %23 = vector.load %arg4[%c2, %c0_14, %c0_15] : memref<25x8x256xf32, #tpu.memory_space<vmem>>, vector<1x8x256xf32>
    %24 = vector.shape_cast %23 : vector<1x8x256xf32> to vector<8x256xf32>
    %25 = arith.mulf %22, %24 : vector<8x256xf32>
    %26 = arith.addf %21, %25 : vector<8x256xf32>
    %c31_i32 = arith.constant 31 : i32
    %27 = tpu.dynamic_rotate %8 by %c31_i32 dim 1 : vector<8x256xf32>, i32 -> vector<8x256xf32>
    %c3 = arith.constant 3 : index
    %c0_16 = arith.constant 0 : index
    %c0_17 = arith.constant 0 : index
    %28 = vector.load %arg4[%c3, %c0_16, %c0_17] : memref<25x8x256xf32, #tpu.memory_space<vmem>>, vector<1x8x256xf32>
    %29 = vector.shape_cast %28 : vector<1x8x256xf32> to vector<8x256xf32>
    %30 = arith.mulf %27, %29 : vector<8x256xf32>
    %31 = arith.addf %26, %30 : vector<8x256xf32>
    %c30_i32 = arith.constant 30 : i32
    %32 = tpu.dynamic_rotate %8 by %c30_i32 dim 1 : vector<8x256xf32>, i32 -> vector<8x256xf32>
    %c4 = arith.constant 4 : index
    %c0_18 = arith.constant 0 : index
    %c0_19 = arith.constant 0 : index
    %33 = vector.load %arg4[%c4, %c0_18, %c0_19] : memref<25x8x256xf32, #tpu.memory_space<vmem>>, vector<1x8x256xf32>
    %34 = vector.shape_cast %33 : vector<1x8x256xf32> to vector<8x256xf32>
    %35 = arith.mulf %32, %34 : vector<8x256xf32>
    %36 = arith.addf %31, %35 : vector<8x256xf32>
    %c18_i32 = arith.constant 18 : i32
    %37 = tpu.dynamic_rotate %8 by %c18_i32 dim 1 : vector<8x256xf32>, i32 -> vector<8x256xf32>
    %c5 = arith.constant 5 : index
    %c0_20 = arith.constant 0 : index
    %c0_21 = arith.constant 0 : index
    %38 = vector.load %arg4[%c5, %c0_20, %c0_21] : memref<25x8x256xf32, #tpu.memory_space<vmem>>, vector<1x8x256xf32>
    %39 = vector.shape_cast %38 : vector<1x8x256xf32> to vector<8x256xf32>
    %40 = arith.mulf %37, %39 : vector<8x256xf32>
    %41 = arith.addf %36, %40 : vector<8x256xf32>
    %c17_i32 = arith.constant 17 : i32
    %42 = tpu.dynamic_rotate %8 by %c17_i32 dim 1 : vector<8x256xf32>, i32 -> vector<8x256xf32>
    %c6 = arith.constant 6 : index
    %c0_22 = arith.constant 0 : index
    %c0_23 = arith.constant 0 : index
    %43 = vector.load %arg4[%c6, %c0_22, %c0_23] : memref<25x8x256xf32, #tpu.memory_space<vmem>>, vector<1x8x256xf32>
    %44 = vector.shape_cast %43 : vector<1x8x256xf32> to vector<8x256xf32>
    %45 = arith.mulf %42, %44 : vector<8x256xf32>
    %46 = arith.addf %41, %45 : vector<8x256xf32>
    %c16_i32 = arith.constant 16 : i32
    %47 = tpu.dynamic_rotate %8 by %c16_i32 dim 1 : vector<8x256xf32>, i32 -> vector<8x256xf32>
    %c7 = arith.constant 7 : index
    %c0_24 = arith.constant 0 : index
    %c0_25 = arith.constant 0 : index
    %48 = vector.load %arg4[%c7, %c0_24, %c0_25] : memref<25x8x256xf32, #tpu.memory_space<vmem>>, vector<1x8x256xf32>
    %49 = vector.shape_cast %48 : vector<1x8x256xf32> to vector<8x256xf32>
    %50 = arith.mulf %47, %49 : vector<8x256xf32>
    %51 = arith.addf %46, %50 : vector<8x256xf32>
    %c15_i32 = arith.constant 15 : i32
    %52 = tpu.dynamic_rotate %8 by %c15_i32 dim 1 : vector<8x256xf32>, i32 -> vector<8x256xf32>
    %c8 = arith.constant 8 : index
    %c0_26 = arith.constant 0 : index
    %c0_27 = arith.constant 0 : index
    %53 = vector.load %arg4[%c8, %c0_26, %c0_27] : memref<25x8x256xf32, #tpu.memory_space<vmem>>, vector<1x8x256xf32>
    %54 = vector.shape_cast %53 : vector<1x8x256xf32> to vector<8x256xf32>
    %55 = arith.mulf %52, %54 : vector<8x256xf32>
    %56 = arith.addf %51, %55 : vector<8x256xf32>
    %c14_i32 = arith.constant 14 : i32
    %57 = tpu.dynamic_rotate %8 by %c14_i32 dim 1 : vector<8x256xf32>, i32 -> vector<8x256xf32>
    %c9 = arith.constant 9 : index
    %c0_28 = arith.constant 0 : index
    %c0_29 = arith.constant 0 : index
    %58 = vector.load %arg4[%c9, %c0_28, %c0_29] : memref<25x8x256xf32, #tpu.memory_space<vmem>>, vector<1x8x256xf32>
    %59 = vector.shape_cast %58 : vector<1x8x256xf32> to vector<8x256xf32>
    %60 = arith.mulf %57, %59 : vector<8x256xf32>
    %61 = arith.addf %56, %60 : vector<8x256xf32>
    %c2_i32 = arith.constant 2 : i32
    %62 = tpu.dynamic_rotate %8 by %c2_i32 dim 1 : vector<8x256xf32>, i32 -> vector<8x256xf32>
    %c10 = arith.constant 10 : index
    %c0_30 = arith.constant 0 : index
    %c0_31 = arith.constant 0 : index
    %63 = vector.load %arg4[%c10, %c0_30, %c0_31] : memref<25x8x256xf32, #tpu.memory_space<vmem>>, vector<1x8x256xf32>
    %64 = vector.shape_cast %63 : vector<1x8x256xf32> to vector<8x256xf32>
    %65 = arith.mulf %62, %64 : vector<8x256xf32>
    %66 = arith.addf %61, %65 : vector<8x256xf32>
    %c1_i32 = arith.constant 1 : i32
    %67 = tpu.dynamic_rotate %8 by %c1_i32 dim 1 : vector<8x256xf32>, i32 -> vector<8x256xf32>
    %c11 = arith.constant 11 : index
    %c0_32 = arith.constant 0 : index
    %c0_33 = arith.constant 0 : index
    %68 = vector.load %arg4[%c11, %c0_32, %c0_33] : memref<25x8x256xf32, #tpu.memory_space<vmem>>, vector<1x8x256xf32>
    %69 = vector.shape_cast %68 : vector<1x8x256xf32> to vector<8x256xf32>
    %70 = arith.mulf %67, %69 : vector<8x256xf32>
    %71 = arith.addf %66, %70 : vector<8x256xf32>
    %c255_i32 = arith.constant 255 : i32
    %72 = tpu.dynamic_rotate %8 by %c255_i32 dim 1 : vector<8x256xf32>, i32 -> vector<8x256xf32>
    %c13 = arith.constant 13 : index
    %c0_34 = arith.constant 0 : index
    %c0_35 = arith.constant 0 : index
    %73 = vector.load %arg4[%c13, %c0_34, %c0_35] : memref<25x8x256xf32, #tpu.memory_space<vmem>>, vector<1x8x256xf32>
    %74 = vector.shape_cast %73 : vector<1x8x256xf32> to vector<8x256xf32>
    %75 = arith.mulf %72, %74 : vector<8x256xf32>
    %76 = arith.addf %71, %75 : vector<8x256xf32>
    %c254_i32 = arith.constant 254 : i32
    %77 = tpu.dynamic_rotate %8 by %c254_i32 dim 1 : vector<8x256xf32>, i32 -> vector<8x256xf32>
    %c14 = arith.constant 14 : index
    %c0_36 = arith.constant 0 : index
    %c0_37 = arith.constant 0 : index
    %78 = vector.load %arg4[%c14, %c0_36, %c0_37] : memref<25x8x256xf32, #tpu.memory_space<vmem>>, vector<1x8x256xf32>
    %79 = vector.shape_cast %78 : vector<1x8x256xf32> to vector<8x256xf32>
    %80 = arith.mulf %77, %79 : vector<8x256xf32>
    %81 = arith.addf %76, %80 : vector<8x256xf32>
    %c242_i32 = arith.constant 242 : i32
    %82 = tpu.dynamic_rotate %8 by %c242_i32 dim 1 : vector<8x256xf32>, i32 -> vector<8x256xf32>
    %c15 = arith.constant 15 : index
    %c0_38 = arith.constant 0 : index
    %c0_39 = arith.constant 0 : index
    %83 = vector.load %arg4[%c15, %c0_38, %c0_39] : memref<25x8x256xf32, #tpu.memory_space<vmem>>, vector<1x8x256xf32>
    %84 = vector.shape_cast %83 : vector<1x8x256xf32> to vector<8x256xf32>
    %85 = arith.mulf %82, %84 : vector<8x256xf32>
    %86 = arith.addf %81, %85 : vector<8x256xf32>
    %c241_i32 = arith.constant 241 : i32
    %87 = tpu.dynamic_rotate %8 by %c241_i32 dim 1 : vector<8x256xf32>, i32 -> vector<8x256xf32>
    %c16 = arith.constant 16 : index
    %c0_40 = arith.constant 0 : index
    %c0_41 = arith.constant 0 : index
    %88 = vector.load %arg4[%c16, %c0_40, %c0_41] : memref<25x8x256xf32, #tpu.memory_space<vmem>>, vector<1x8x256xf32>
    %89 = vector.shape_cast %88 : vector<1x8x256xf32> to vector<8x256xf32>
    %90 = arith.mulf %87, %89 : vector<8x256xf32>
    %91 = arith.addf %86, %90 : vector<8x256xf32>
    %c240_i32 = arith.constant 240 : i32
    %92 = tpu.dynamic_rotate %8 by %c240_i32 dim 1 : vector<8x256xf32>, i32 -> vector<8x256xf32>
    %c17 = arith.constant 17 : index
    %c0_42 = arith.constant 0 : index
    %c0_43 = arith.constant 0 : index
    %93 = vector.load %arg4[%c17, %c0_42, %c0_43] : memref<25x8x256xf32, #tpu.memory_space<vmem>>, vector<1x8x256xf32>
    %94 = vector.shape_cast %93 : vector<1x8x256xf32> to vector<8x256xf32>
    %95 = arith.mulf %92, %94 : vector<8x256xf32>
    %96 = arith.addf %91, %95 : vector<8x256xf32>
    %c239_i32 = arith.constant 239 : i32
    %97 = tpu.dynamic_rotate %8 by %c239_i32 dim 1 : vector<8x256xf32>, i32 -> vector<8x256xf32>
    %c18 = arith.constant 18 : index
    %c0_44 = arith.constant 0 : index
    %c0_45 = arith.constant 0 : index
    %98 = vector.load %arg4[%c18, %c0_44, %c0_45] : memref<25x8x256xf32, #tpu.memory_space<vmem>>, vector<1x8x256xf32>
    %99 = vector.shape_cast %98 : vector<1x8x256xf32> to vector<8x256xf32>
    %100 = arith.mulf %97, %99 : vector<8x256xf32>
    %101 = arith.addf %96, %100 : vector<8x256xf32>
    %c238_i32 = arith.constant 238 : i32
    %102 = tpu.dynamic_rotate %8 by %c238_i32 dim 1 : vector<8x256xf32>, i32 -> vector<8x256xf32>
    %c19 = arith.constant 19 : index
    %c0_46 = arith.constant 0 : index
    %c0_47 = arith.constant 0 : index
    %103 = vector.load %arg4[%c19, %c0_46, %c0_47] : memref<25x8x256xf32, #tpu.memory_space<vmem>>, vector<1x8x256xf32>
    %104 = vector.shape_cast %103 : vector<1x8x256xf32> to vector<8x256xf32>
    %105 = arith.mulf %102, %104 : vector<8x256xf32>
    %106 = arith.addf %101, %105 : vector<8x256xf32>
    %c226_i32 = arith.constant 226 : i32
    %107 = tpu.dynamic_rotate %8 by %c226_i32 dim 1 : vector<8x256xf32>, i32 -> vector<8x256xf32>
    %c20 = arith.constant 20 : index
    %c0_48 = arith.constant 0 : index
    %c0_49 = arith.constant 0 : index
    %108 = vector.load %arg4[%c20, %c0_48, %c0_49] : memref<25x8x256xf32, #tpu.memory_space<vmem>>, vector<1x8x256xf32>
    %109 = vector.shape_cast %108 : vector<1x8x256xf32> to vector<8x256xf32>
    %110 = arith.mulf %107, %109 : vector<8x256xf32>
    %111 = arith.addf %106, %110 : vector<8x256xf32>
    %c225_i32 = arith.constant 225 : i32
    %112 = tpu.dynamic_rotate %8 by %c225_i32 dim 1 : vector<8x256xf32>, i32 -> vector<8x256xf32>
    %c21 = arith.constant 21 : index
    %c0_50 = arith.constant 0 : index
    %c0_51 = arith.constant 0 : index
    %113 = vector.load %arg4[%c21, %c0_50, %c0_51] : memref<25x8x256xf32, #tpu.memory_space<vmem>>, vector<1x8x256xf32>
    %114 = vector.shape_cast %113 : vector<1x8x256xf32> to vector<8x256xf32>
    %115 = arith.mulf %112, %114 : vector<8x256xf32>
    %116 = arith.addf %111, %115 : vector<8x256xf32>
    %c224_i32 = arith.constant 224 : i32
    %117 = tpu.dynamic_rotate %8 by %c224_i32 dim 1 : vector<8x256xf32>, i32 -> vector<8x256xf32>
    %c22 = arith.constant 22 : index
    %c0_52 = arith.constant 0 : index
    %c0_53 = arith.constant 0 : index
    %118 = vector.load %arg4[%c22, %c0_52, %c0_53] : memref<25x8x256xf32, #tpu.memory_space<vmem>>, vector<1x8x256xf32>
    %119 = vector.shape_cast %118 : vector<1x8x256xf32> to vector<8x256xf32>
    %120 = arith.mulf %117, %119 : vector<8x256xf32>
    %121 = arith.addf %116, %120 : vector<8x256xf32>
    %c223_i32 = arith.constant 223 : i32
    %122 = tpu.dynamic_rotate %8 by %c223_i32 dim 1 : vector<8x256xf32>, i32 -> vector<8x256xf32>
    %c23 = arith.constant 23 : index
    %c0_54 = arith.constant 0 : index
    %c0_55 = arith.constant 0 : index
    %123 = vector.load %arg4[%c23, %c0_54, %c0_55] : memref<25x8x256xf32, #tpu.memory_space<vmem>>, vector<1x8x256xf32>
    %124 = vector.shape_cast %123 : vector<1x8x256xf32> to vector<8x256xf32>
    %125 = arith.mulf %122, %124 : vector<8x256xf32>
    %126 = arith.addf %121, %125 : vector<8x256xf32>
    %c222_i32 = arith.constant 222 : i32
    %127 = tpu.dynamic_rotate %8 by %c222_i32 dim 1 : vector<8x256xf32>, i32 -> vector<8x256xf32>
    %c24 = arith.constant 24 : index
    %c0_56 = arith.constant 0 : index
    %c0_57 = arith.constant 0 : index
    %128 = vector.load %arg4[%c24, %c0_56, %c0_57] : memref<25x8x256xf32, #tpu.memory_space<vmem>>, vector<1x8x256xf32>
    %129 = vector.shape_cast %128 : vector<1x8x256xf32> to vector<8x256xf32>
    %130 = arith.mulf %127, %129 : vector<8x256xf32>
    %131 = arith.addf %126, %130 : vector<8x256xf32>
    %c0_58 = arith.constant 0 : index
    %c0_59 = arith.constant 0 : index
    %c0_60 = arith.constant 0 : index
    %132 = vector.load %arg5[%c0_58, %c0_59, %c0_60] : memref<2x8x256xf32, #tpu.memory_space<vmem>>, vector<1x8x256xf32>
    %133 = vector.shape_cast %132 : vector<1x8x256xf32> to vector<8x256xf32>
    %134 = vector.shape_cast %131 : vector<8x256xf32> to vector<1x8x256xf32>
    tpu.vector_store %arg5[%c0_58, %c0_59, %c0_60], %134 {strides = array<i32>} : memref<2x8x256xf32, #tpu.memory_space<vmem>>, vector<1x8x256xf32>,
    %c1_61 = arith.constant 1 : index
    %c0_62 = arith.constant 0 : index
    %c0_63 = arith.constant 0 : index
    %135 = vector.load %arg1[%c1_61, %c0_62, %c0_63] : memref<2x8x256xf32, #tpu.memory_space<vmem>>, vector<1x8x256xf32>
    %136 = vector.shape_cast %135 : vector<1x8x256xf32> to vector<8x256xf32>
    %cst_64 = arith.constant dense<0.000000e+00> : vector<8x256xf32>
    %137 = tpu.matmul %0, %136, %cst_64 {dimension_numbers = #tpu.dot_dimension_numbers<[1], [0], [0], [1], [0, 0, 1, 1], [], []>} : vector<8x8xf32>, vector<8x256xf32>, vector<8x256xf32> -> vector<8x256xf32>
    %138 = vector.broadcast %1 : vector<8x1xf32> to vector<8x256xf32>
    %139 = arith.addf %137, %138 : vector<8x256xf32>
    %cst_65 = arith.constant 0.000000e+00 : f32
    %140 = vector.broadcast %cst_65 : f32 to vector<8x256xf32>
    %141 = arith.maximumf %139, %140 : vector<8x256xf32>
    %c12_66 = arith.constant 12 : index
    %c0_67 = arith.constant 0 : index
    %c0_68 = arith.constant 0 : index
    %142 = vector.load %arg4[%c12_66, %c0_67, %c0_68] : memref<25x8x256xf32, #tpu.memory_space<vmem>>, vector<1x8x256xf32>
    %143 = vector.shape_cast %142 : vector<1x8x256xf32> to vector<8x256xf32>
    %144 = arith.mulf %141, %143 : vector<8x256xf32>
    %c34_i32_69 = arith.constant 34 : i32
    %145 = tpu.dynamic_rotate %141 by %c34_i32_69 dim 1 : vector<8x256xf32>, i32 -> vector<8x256xf32>
    %c0_70 = arith.constant 0 : index
    %c0_71 = arith.constant 0 : index
    %c0_72 = arith.constant 0 : index
    %146 = vector.load %arg4[%c0_70, %c0_71, %c0_72] : memref<25x8x256xf32, #tpu.memory_space<vmem>>, vector<1x8x256xf32>
    %147 = vector.shape_cast %146 : vector<1x8x256xf32> to vector<8x256xf32>
    %148 = arith.mulf %145, %147 : vector<8x256xf32>
    %149 = arith.addf %144, %148 : vector<8x256xf32>
    %c33_i32_73 = arith.constant 33 : i32
    %150 = tpu.dynamic_rotate %141 by %c33_i32_73 dim 1 : vector<8x256xf32>, i32 -> vector<8x256xf32>
    %c1_74 = arith.constant 1 : index
    %c0_75 = arith.constant 0 : index
    %c0_76 = arith.constant 0 : index
    %151 = vector.load %arg4[%c1_74, %c0_75, %c0_76] : memref<25x8x256xf32, #tpu.memory_space<vmem>>, vector<1x8x256xf32>
    %152 = vector.shape_cast %151 : vector<1x8x256xf32> to vector<8x256xf32>
    %153 = arith.mulf %150, %152 : vector<8x256xf32>
    %154 = arith.addf %149, %153 : vector<8x256xf32>
    %c32_i32_77 = arith.constant 32 : i32
    %155 = tpu.dynamic_rotate %141 by %c32_i32_77 dim 1 : vector<8x256xf32>, i32 -> vector<8x256xf32>
    %c2_78 = arith.constant 2 : index
    %c0_79 = arith.constant 0 : index
    %c0_80 = arith.constant 0 : index
    %156 = vector.load %arg4[%c2_78, %c0_79, %c0_80] : memref<25x8x256xf32, #tpu.memory_space<vmem>>, vector<1x8x256xf32>
    %157 = vector.shape_cast %156 : vector<1x8x256xf32> to vector<8x256xf32>
    %158 = arith.mulf %155, %157 : vector<8x256xf32>
    %159 = arith.addf %154, %158 : vector<8x256xf32>
    %c31_i32_81 = arith.constant 31 : i32
    %160 = tpu.dynamic_rotate %141 by %c31_i32_81 dim 1 : vector<8x256xf32>, i32 -> vector<8x256xf32>
    %c3_82 = arith.constant 3 : index
    %c0_83 = arith.constant 0 : index
    %c0_84 = arith.constant 0 : index
    %161 = vector.load %arg4[%c3_82, %c0_83, %c0_84] : memref<25x8x256xf32, #tpu.memory_space<vmem>>, vector<1x8x256xf32>
    %162 = vector.shape_cast %161 : vector<1x8x256xf32> to vector<8x256xf32>
    %163 = arith.mulf %160, %162 : vector<8x256xf32>
    %164 = arith.addf %159, %163 : vector<8x256xf32>
    %c30_i32_85 = arith.constant 30 : i32
    %165 = tpu.dynamic_rotate %141 by %c30_i32_85 dim 1 : vector<8x256xf32>, i32 -> vector<8x256xf32>
    %c4_86 = arith.constant 4 : index
    %c0_87 = arith.constant 0 : index
    %c0_88 = arith.constant 0 : index
    %166 = vector.load %arg4[%c4_86, %c0_87, %c0_88] : memref<25x8x256xf32, #tpu.memory_space<vmem>>, vector<1x8x256xf32>
    %167 = vector.shape_cast %166 : vector<1x8x256xf32> to vector<8x256xf32>
    %168 = arith.mulf %165, %167 : vector<8x256xf32>
    %169 = arith.addf %164, %168 : vector<8x256xf32>
    %c18_i32_89 = arith.constant 18 : i32
    %170 = tpu.dynamic_rotate %141 by %c18_i32_89 dim 1 : vector<8x256xf32>, i32 -> vector<8x256xf32>
    %c5_90 = arith.constant 5 : index
    %c0_91 = arith.constant 0 : index
    %c0_92 = arith.constant 0 : index
    %171 = vector.load %arg4[%c5_90, %c0_91, %c0_92] : memref<25x8x256xf32, #tpu.memory_space<vmem>>, vector<1x8x256xf32>
    %172 = vector.shape_cast %171 : vector<1x8x256xf32> to vector<8x256xf32>
    %173 = arith.mulf %170, %172 : vector<8x256xf32>
    %174 = arith.addf %169, %173 : vector<8x256xf32>
    %c17_i32_93 = arith.constant 17 : i32
    %175 = tpu.dynamic_rotate %141 by %c17_i32_93 dim 1 : vector<8x256xf32>, i32 -> vector<8x256xf32>
    %c6_94 = arith.constant 6 : index
    %c0_95 = arith.constant 0 : index
    %c0_96 = arith.constant 0 : index
    %176 = vector.load %arg4[%c6_94, %c0_95, %c0_96] : memref<25x8x256xf32, #tpu.memory_space<vmem>>, vector<1x8x256xf32>
    %177 = vector.shape_cast %176 : vector<1x8x256xf32> to vector<8x256xf32>
    %178 = arith.mulf %175, %177 : vector<8x256xf32>
    %179 = arith.addf %174, %178 : vector<8x256xf32>
    %c16_i32_97 = arith.constant 16 : i32
    %180 = tpu.dynamic_rotate %141 by %c16_i32_97 dim 1 : vector<8x256xf32>, i32 -> vector<8x256xf32>
    %c7_98 = arith.constant 7 : index
    %c0_99 = arith.constant 0 : index
    %c0_100 = arith.constant 0 : index
    %181 = vector.load %arg4[%c7_98, %c0_99, %c0_100] : memref<25x8x256xf32, #tpu.memory_space<vmem>>, vector<1x8x256xf32>
    %182 = vector.shape_cast %181 : vector<1x8x256xf32> to vector<8x256xf32>
    %183 = arith.mulf %180, %182 : vector<8x256xf32>
    %184 = arith.addf %179, %183 : vector<8x256xf32>
    %c15_i32_101 = arith.constant 15 : i32
    %185 = tpu.dynamic_rotate %141 by %c15_i32_101 dim 1 : vector<8x256xf32>, i32 -> vector<8x256xf32>
    %c8_102 = arith.constant 8 : index
    %c0_103 = arith.constant 0 : index
    %c0_104 = arith.constant 0 : index
    %186 = vector.load %arg4[%c8_102, %c0_103, %c0_104] : memref<25x8x256xf32, #tpu.memory_space<vmem>>, vector<1x8x256xf32>
    %187 = vector.shape_cast %186 : vector<1x8x256xf32> to vector<8x256xf32>
    %188 = arith.mulf %185, %187 : vector<8x256xf32>
    %189 = arith.addf %184, %188 : vector<8x256xf32>
    %c14_i32_105 = arith.constant 14 : i32
    %190 = tpu.dynamic_rotate %141 by %c14_i32_105 dim 1 : vector<8x256xf32>, i32 -> vector<8x256xf32>
    %c9_106 = arith.constant 9 : index
    %c0_107 = arith.constant 0 : index
    %c0_108 = arith.constant 0 : index
    %191 = vector.load %arg4[%c9_106, %c0_107, %c0_108] : memref<25x8x256xf32, #tpu.memory_space<vmem>>, vector<1x8x256xf32>
    %192 = vector.shape_cast %191 : vector<1x8x256xf32> to vector<8x256xf32>
    %193 = arith.mulf %190, %192 : vector<8x256xf32>
    %194 = arith.addf %189, %193 : vector<8x256xf32>
    %c2_i32_109 = arith.constant 2 : i32
    %195 = tpu.dynamic_rotate %141 by %c2_i32_109 dim 1 : vector<8x256xf32>, i32 -> vector<8x256xf32>
    %c10_110 = arith.constant 10 : index
    %c0_111 = arith.constant 0 : index
    %c0_112 = arith.constant 0 : index
    %196 = vector.load %arg4[%c10_110, %c0_111, %c0_112] : memref<25x8x256xf32, #tpu.memory_space<vmem>>, vector<1x8x256xf32>
    %197 = vector.shape_cast %196 : vector<1x8x256xf32> to vector<8x256xf32>
    %198 = arith.mulf %195, %197 : vector<8x256xf32>
    %199 = arith.addf %194, %198 : vector<8x256xf32>
    %c1_i32_113 = arith.constant 1 : i32
    %200 = tpu.dynamic_rotate %141 by %c1_i32_113 dim 1 : vector<8x256xf32>, i32 -> vector<8x256xf32>
    %c11_114 = arith.constant 11 : index
    %c0_115 = arith.constant 0 : index
    %c0_116 = arith.constant 0 : index
    %201 = vector.load %arg4[%c11_114, %c0_115, %c0_116] : memref<25x8x256xf32, #tpu.memory_space<vmem>>, vector<1x8x256xf32>
    %202 = vector.shape_cast %201 : vector<1x8x256xf32> to vector<8x256xf32>
    %203 = arith.mulf %200, %202 : vector<8x256xf32>
    %204 = arith.addf %199, %203 : vector<8x256xf32>
    %c255_i32_117 = arith.constant 255 : i32
    %205 = tpu.dynamic_rotate %141 by %c255_i32_117 dim 1 : vector<8x256xf32>, i32 -> vector<8x256xf32>
    %c13_118 = arith.constant 13 : index
    %c0_119 = arith.constant 0 : index
    %c0_120 = arith.constant 0 : index
    %206 = vector.load %arg4[%c13_118, %c0_119, %c0_120] : memref<25x8x256xf32, #tpu.memory_space<vmem>>, vector<1x8x256xf32>
    %207 = vector.shape_cast %206 : vector<1x8x256xf32> to vector<8x256xf32>
    %208 = arith.mulf %205, %207 : vector<8x256xf32>
    %209 = arith.addf %204, %208 : vector<8x256xf32>
    %c254_i32_121 = arith.constant 254 : i32
    %210 = tpu.dynamic_rotate %141 by %c254_i32_121 dim 1 : vector<8x256xf32>, i32 -> vector<8x256xf32>
    %c14_122 = arith.constant 14 : index
    %c0_123 = arith.constant 0 : index
    %c0_124 = arith.constant 0 : index
    %211 = vector.load %arg4[%c14_122, %c0_123, %c0_124] : memref<25x8x256xf32, #tpu.memory_space<vmem>>, vector<1x8x256xf32>
    %212 = vector.shape_cast %211 : vector<1x8x256xf32> to vector<8x256xf32>
    %213 = arith.mulf %210, %212 : vector<8x256xf32>
    %214 = arith.addf %209, %213 : vector<8x256xf32>
    %c242_i32_125 = arith.constant 242 : i32
    %215 = tpu.dynamic_rotate %141 by %c242_i32_125 dim 1 : vector<8x256xf32>, i32 -> vector<8x256xf32>
    %c15_126 = arith.constant 15 : index
    %c0_127 = arith.constant 0 : index
    %c0_128 = arith.constant 0 : index
    %216 = vector.load %arg4[%c15_126, %c0_127, %c0_128] : memref<25x8x256xf32, #tpu.memory_space<vmem>>, vector<1x8x256xf32>
    %217 = vector.shape_cast %216 : vector<1x8x256xf32> to vector<8x256xf32>
    %218 = arith.mulf %215, %217 : vector<8x256xf32>
    %219 = arith.addf %214, %218 : vector<8x256xf32>
    %c241_i32_129 = arith.constant 241 : i32
    %220 = tpu.dynamic_rotate %141 by %c241_i32_129 dim 1 : vector<8x256xf32>, i32 -> vector<8x256xf32>
    %c16_130 = arith.constant 16 : index
    %c0_131 = arith.constant 0 : index
    %c0_132 = arith.constant 0 : index
    %221 = vector.load %arg4[%c16_130, %c0_131, %c0_132] : memref<25x8x256xf32, #tpu.memory_space<vmem>>, vector<1x8x256xf32>
    %222 = vector.shape_cast %221 : vector<1x8x256xf32> to vector<8x256xf32>
    %223 = arith.mulf %220, %222 : vector<8x256xf32>
    %224 = arith.addf %219, %223 : vector<8x256xf32>
    %c240_i32_133 = arith.constant 240 : i32
    %225 = tpu.dynamic_rotate %141 by %c240_i32_133 dim 1 : vector<8x256xf32>, i32 -> vector<8x256xf32>
    %c17_134 = arith.constant 17 : index
    %c0_135 = arith.constant 0 : index
    %c0_136 = arith.constant 0 : index
    %226 = vector.load %arg4[%c17_134, %c0_135, %c0_136] : memref<25x8x256xf32, #tpu.memory_space<vmem>>, vector<1x8x256xf32>
    %227 = vector.shape_cast %226 : vector<1x8x256xf32> to vector<8x256xf32>
    %228 = arith.mulf %225, %227 : vector<8x256xf32>
    %229 = arith.addf %224, %228 : vector<8x256xf32>
    %c239_i32_137 = arith.constant 239 : i32
    %230 = tpu.dynamic_rotate %141 by %c239_i32_137 dim 1 : vector<8x256xf32>, i32 -> vector<8x256xf32>
    %c18_138 = arith.constant 18 : index
    %c0_139 = arith.constant 0 : index
    %c0_140 = arith.constant 0 : index
    %231 = vector.load %arg4[%c18_138, %c0_139, %c0_140] : memref<25x8x256xf32, #tpu.memory_space<vmem>>, vector<1x8x256xf32>
    %232 = vector.shape_cast %231 : vector<1x8x256xf32> to vector<8x256xf32>
    %233 = arith.mulf %230, %232 : vector<8x256xf32>
    %234 = arith.addf %229, %233 : vector<8x256xf32>
    %c238_i32_141 = arith.constant 238 : i32
    %235 = tpu.dynamic_rotate %141 by %c238_i32_141 dim 1 : vector<8x256xf32>, i32 -> vector<8x256xf32>
    %c19_142 = arith.constant 19 : index
    %c0_143 = arith.constant 0 : index
    %c0_144 = arith.constant 0 : index
    %236 = vector.load %arg4[%c19_142, %c0_143, %c0_144] : memref<25x8x256xf32, #tpu.memory_space<vmem>>, vector<1x8x256xf32>
    %237 = vector.shape_cast %236 : vector<1x8x256xf32> to vector<8x256xf32>
    %238 = arith.mulf %235, %237 : vector<8x256xf32>
    %239 = arith.addf %234, %238 : vector<8x256xf32>
    %c226_i32_145 = arith.constant 226 : i32
    %240 = tpu.dynamic_rotate %141 by %c226_i32_145 dim 1 : vector<8x256xf32>, i32 -> vector<8x256xf32>
    %c20_146 = arith.constant 20 : index
    %c0_147 = arith.constant 0 : index
    %c0_148 = arith.constant 0 : index
    %241 = vector.load %arg4[%c20_146, %c0_147, %c0_148] : memref<25x8x256xf32, #tpu.memory_space<vmem>>, vector<1x8x256xf32>
    %242 = vector.shape_cast %241 : vector<1x8x256xf32> to vector<8x256xf32>
    %243 = arith.mulf %240, %242 : vector<8x256xf32>
    %244 = arith.addf %239, %243 : vector<8x256xf32>
    %c225_i32_149 = arith.constant 225 : i32
    %245 = tpu.dynamic_rotate %141 by %c225_i32_149 dim 1 : vector<8x256xf32>, i32 -> vector<8x256xf32>
    %c21_150 = arith.constant 21 : index
    %c0_151 = arith.constant 0 : index
    %c0_152 = arith.constant 0 : index
    %246 = vector.load %arg4[%c21_150, %c0_151, %c0_152] : memref<25x8x256xf32, #tpu.memory_space<vmem>>, vector<1x8x256xf32>
    %247 = vector.shape_cast %246 : vector<1x8x256xf32> to vector<8x256xf32>
    %248 = arith.mulf %245, %247 : vector<8x256xf32>
    %249 = arith.addf %244, %248 : vector<8x256xf32>
    %c224_i32_153 = arith.constant 224 : i32
    %250 = tpu.dynamic_rotate %141 by %c224_i32_153 dim 1 : vector<8x256xf32>, i32 -> vector<8x256xf32>
    %c22_154 = arith.constant 22 : index
    %c0_155 = arith.constant 0 : index
    %c0_156 = arith.constant 0 : index
    %251 = vector.load %arg4[%c22_154, %c0_155, %c0_156] : memref<25x8x256xf32, #tpu.memory_space<vmem>>, vector<1x8x256xf32>
    %252 = vector.shape_cast %251 : vector<1x8x256xf32> to vector<8x256xf32>
    %253 = arith.mulf %250, %252 : vector<8x256xf32>
    %254 = arith.addf %249, %253 : vector<8x256xf32>
    %c223_i32_157 = arith.constant 223 : i32
    %255 = tpu.dynamic_rotate %141 by %c223_i32_157 dim 1 : vector<8x256xf32>, i32 -> vector<8x256xf32>
    %c23_158 = arith.constant 23 : index
    %c0_159 = arith.constant 0 : index
    %c0_160 = arith.constant 0 : index
    %256 = vector.load %arg4[%c23_158, %c0_159, %c0_160] : memref<25x8x256xf32, #tpu.memory_space<vmem>>, vector<1x8x256xf32>
    %257 = vector.shape_cast %256 : vector<1x8x256xf32> to vector<8x256xf32>
    %258 = arith.mulf %255, %257 : vector<8x256xf32>
    %259 = arith.addf %254, %258 : vector<8x256xf32>
    %c222_i32_161 = arith.constant 222 : i32
    %260 = tpu.dynamic_rotate %141 by %c222_i32_161 dim 1 : vector<8x256xf32>, i32 -> vector<8x256xf32>
    %c24_162 = arith.constant 24 : index
    %c0_163 = arith.constant 0 : index
    %c0_164 = arith.constant 0 : index
    %261 = vector.load %arg4[%c24_162, %c0_163, %c0_164] : memref<25x8x256xf32, #tpu.memory_space<vmem>>, vector<1x8x256xf32>
    %262 = vector.shape_cast %261 : vector<1x8x256xf32> to vector<8x256xf32>
    %263 = arith.mulf %260, %262 : vector<8x256xf32>
    %264 = arith.addf %259, %263 : vector<8x256xf32>
    %c1_165 = arith.constant 1 : index
    %c0_166 = arith.constant 0 : index
    %c0_167 = arith.constant 0 : index
    %265 = vector.load %arg5[%c1_165, %c0_166, %c0_167] : memref<2x8x256xf32, #tpu.memory_space<vmem>>, vector<1x8x256xf32>
    %266 = vector.shape_cast %265 : vector<1x8x256xf32> to vector<8x256xf32>
    %267 = vector.shape_cast %264 : vector<8x256xf32> to vector<1x8x256xf32>
    tpu.vector_store %arg5[%c1_165, %c0_166, %c0_167], %267 {strides = array<i32>} : memref<2x8x256xf32, #tpu.memory_space<vmem>>, vector<1x8x256xf32>,
    return
  }
  func.func @transform_0(%arg0: i32) -> (i32, i32, i32) {
    %c0_i32 = arith.constant 0 : i32
    %c0_i32_0 = arith.constant 0 : i32
    %c0_i32_1 = arith.constant 0 : i32
    return %arg0, %c0_i32, %c0_i32_0 : i32, i32, i32
  }
  func.func @transform_1(%arg0: i32) -> (i32, i32) {
    %c0_i32 = arith.constant 0 : i32
    %c0_i32_0 = arith.constant 0 : i32
    %c0_i32_1 = arith.constant 0 : i32
    return %c0_i32, %c0_i32_0 : i32, i32
  }
  func.func @transform_2(%arg0: i32) -> (i32, i32) {
    %c0_i32 = arith.constant 0 : i32
    %c0_i32_0 = arith.constant 0 : i32
    %c0_i32_1 = arith.constant 0 : i32
    return %c0_i32, %c0_i32_0 : i32, i32
  }
  func.func @transform_3(%arg0: i32) -> (i32, i32, i32) {
    %c0_i32 = arith.constant 0 : i32
    %c0_i32_0 = arith.constant 0 : i32
    %c0_i32_1 = arith.constant 0 : i32
    %c0_i32_2 = arith.constant 0 : i32
    return %c0_i32, %c0_i32_0, %c0_i32_1 : i32, i32, i32
  }
  func.func @transform_4(%arg0: i32) -> (i32, i32, i32) {
    %c0_i32 = arith.constant 0 : i32
    %c0_i32_0 = arith.constant 0 : i32
    %c0_i32_1 = arith.constant 0 : i32
    return %arg0, %c0_i32, %c0_i32_0 : i32, i32, i32
  }
}

</mosaic_0001>

<llo_original>
// kernel: tpu_custom_call.1
$region0: #{tpu_custom_call.1}
  #allocation0 [shape = 'u32[]', space=smem, size = 0x4, offset = 0x4, fixed_abs, tag = 'smem constant byte address 0x4 - core index']
  #allocation1 [shape = 'u32[144,128]{1,0:T(1,128)}', space=vmem, size = 0x12000, scoped, tag = 'internal scratch']
  %s0 = inlined_call_operand.hbm [shape: f32[2,8,256], index: 0, kind: input, shape index: {}]
  %s1 = inlined_call_operand.vmem [shape: f32[8,8], index: 1, kind: input, shape index: {}]
  %s2 = inlined_call_operand.vmem [shape: f32[8,1], index: 2, kind: input, shape index: {}]
  %s3 = inlined_call_operand.hbm [shape: f32[25,8,256], index: 3, kind: input, shape index: {}]
  %s4 = inlined_call_operand.hbm [shape: f32[2,8,256], index: 4, kind: output, shape index: {}]
  %s5 = sld [smem:[#allocation0]]
  $region34: #{tpu_custom_call.1} parent=0
    _
  %s7 = ssub.s32 1, %s5
  %s8 = scalar_select 0, %s7, %s5
  $region1: #{tpu_custom_call.1} parent=0
    #allocation2 [shape = 'u8[16384]{0}', space=vmem, size = 0x4000, scoped, tag = 'input window, operand 0, single buffered']
    #allocation3 [shape = 's32[1]{0}', space=sflag, size = 0x4, scoped, tag = 'scoped memory for tpu_custom_call.1']
    #allocation4 [shape = 's32[1]{0}', space=sflag, size = 0x4, scoped, tag = 'scoped memory for tpu_custom_call.1']
    #allocation5 [shape = 'u8[204800]{0}', space=vmem, size = 0x32000, scoped, tag = 'input window, operand 3, single buffered']
    #allocation6 [shape = 's32[1]{0}', space=sflag, size = 0x4, scoped, tag = 'scoped memory for tpu_custom_call.1']
    #allocation7 [shape = 'u8[16384]{0}', space=vmem, size = 0x4000, scoped, tag = 'output window, operand 0, single buffered']
    %9 = vsyncpa [#allocation3], 0
    %10 = vsyncpa [#allocation6], 0
    %11 = vsyncpa [#allocation4], 0
    // Predicated region
    $region2: #{tpu_custom_call.1} parent=1 // pred_check
      _
    $region3: #{tpu_custom_call.1} parent=1 // pred_check_branch
      %13 = sbr.rel (0) target = $region5
    $region4: #{tpu_custom_call.1} parent=1 // pred_region
      %s15 = ssub.s32 512, 512
      %16 = vsyncadd [#allocation3], %s15
      %s17 = sshll.u32 [#allocation2], 4
      %s18 = int_to_ptr.vmem [resolvable:$true] %s17
      %23 = dma.hbm_to_vmem [thread:$0]  %s0, 512, %s18, [#allocation3], 256, 256, 16
    $region5: #{tpu_custom_call.1} parent=1 // pred_fallthru
      _
    // Predicated region
    $region6: #{tpu_custom_call.1} parent=1 // pred_check
      _
    $region7: #{tpu_custom_call.1} parent=1 // pred_check_branch
      %25 = sbr.rel (0) target = $region9
    $region8: #{tpu_custom_call.1} parent=1 // pred_region
      _
    $region9: #{tpu_custom_call.1} parent=1 // pred_fallthru
      _
    // Predicated region
    $region10: #{tpu_custom_call.1} parent=1 // pred_check
      _
    $region11: #{tpu_custom_call.1} parent=1 // pred_check_branch
      %27 = sbr.rel (0) target = $region13
    $region12: #{tpu_custom_call.1} parent=1 // pred_region
      _
    $region13: #{tpu_custom_call.1} parent=1 // pred_fallthru
      _
    // Predicated region
    $region14: #{tpu_custom_call.1} parent=1 // pred_check
      _
    $region15: #{tpu_custom_call.1} parent=1 // pred_check_branch
      %29 = sbr.rel (0) target = $region17
    $region16: #{tpu_custom_call.1} parent=1 // pred_region
      %s31 = ssub.s32 6400, 6400
      %32 = vsyncadd [#allocation6], %s31
      %s33 = sshll.u32 [#allocation5], 4
      %s34 = int_to_ptr.vmem [resolvable:$true] %s33
      %39 = dma.hbm_to_vmem [thread:$0]  %s3, 6400, %s34, [#allocation6], 256, 256, 16
    $region17: #{tpu_custom_call.1} parent=1 // pred_fallthru
      _
    // Predicated region
    $region18: #{tpu_custom_call.1} parent=1 // pred_check
      _
    $region19: #{tpu_custom_call.1} parent=1 // pred_check_branch
      %41 = sbr.rel (0) target = $region21
    $region20: #{tpu_custom_call.1} parent=1 // pred_region
      %42 = dma.done [#allocation3], 512
    $region21: #{tpu_custom_call.1} parent=1 // pred_fallthru
      _
    // Predicated region
    $region22: #{tpu_custom_call.1} parent=1 // pred_check
      _
    $region23: #{tpu_custom_call.1} parent=1 // pred_check_branch
      %44 = sbr.rel (0) target = $region25
    $region24: #{tpu_custom_call.1} parent=1 // pred_region
      %45 = dma.done [#allocation6], 6400
    $region25: #{tpu_custom_call.1} parent=1 // pred_fallthru
      _
    %v46 = vld [vmem:[%s1] sm:$0xff]
    %v47 = vld [vmem:[%s2] sm:$0xff]
    %v48 = vld [vmem:[#allocation2] sm:$0xff]
    %v49 = vld [vmem:[#allocation2 + $0x8] sm:$0xff]
    %51 = vset.pattern.permute.xlu0 0
    %52 = vperm.xlu0 %51, %v47
    %v53 = vpop.permute.xlu0 %52
    %vm55 = vcmask 64512
    %v57 = vsel %vm55, %v46, 0
    %59 = vmatprep.subr.mxu0 %v49
    %60 = vmatpush1.msra.mxu0 %v48
    %61 = vmatprep.subr.mxu0 0.0
    %62 = vmatpush1.msra.mxu0 0.0
    %63 = vmatprep.subr.mxu0 0.0
    %64 = vmatpush1.msra.mxu0 0.0
    %65 = vmatprep.subr.mxu0 0.0
    %66 = vmatpush1.msra.mxu0 0.0
    %67 = vmatprep.subr.mxu0 0.0
    %68 = vmatpush1.msra.mxu0 0.0
    %69 = vmatprep.subr.mxu0 0.0
    %70 = vmatpush1.msra.mxu0 0.0
    %71 = vmatprep.subr.mxu0 0.0
    %72 = vmatpush1.msra.mxu0 0.0
    %73 = vmatprep.subr.mxu0 0.0
    %74 = vmatpush1.msra.mxu0 0.0
    %75 = vmatprep.subr.mxu0 0.0
    %76 = vmatpush1.msra.mxu0 0.0
    %77 = vmatprep.subr.mxu0 0.0
    %78 = vmatpush1.msra.mxu0 0.0
    %79 = vmatprep.subr.mxu0 0.0
    %80 = vmatpush1.msra.mxu0 0.0
    %81 = vmatprep.subr.mxu0 0.0
    %82 = vmatpush1.msra.mxu0 0.0
    %83 = vmatprep.subr.mxu0 0.0
    %84 = vmatpush1.msra.mxu0 0.0
    %85 = vmatprep.subr.mxu0 0.0
    %86 = vmatpush1.msra.mxu0 0.0
    %87 = vmatprep.subr.mxu0 0.0
    %88 = vmatpush1.msra.mxu0 0.0
    %89 = vmatprep.subr.mxu0 0.0
    %90 = vmatpush1.msra.mxu0 0.0
    %91 = vmatprep.subr.mxu0 0.0
    %92 = vmatpush1.msra.mxu0 0.0
    %93 = vmatprep.subr.mxu0 0.0
    %94 = vmatpush1.msra.mxu0 0.0
    %95 = vmatprep.subr.mxu0 0.0
    %96 = vmatpush1.msra.mxu0 0.0
    %97 = vmatprep.subr.mxu0 0.0
    %98 = vmatpush1.msra.mxu0 0.0
    %99 = vmatprep.subr.mxu0 0.0
    %100 = vmatpush1.msra.mxu0 0.0
    %101 = vmatprep.subr.mxu0 0.0
    %102 = vmatpush1.msra.mxu0 0.0
    %103 = vmatprep.subr.mxu0 0.0
    %104 = vmatpush1.msra.mxu0 0.0
    %105 = vmatprep.subr.mxu0 0.0
    %106 = vmatpush1.msra.mxu0 0.0
    %107 = vmatprep.subr.mxu0 0.0
    %108 = vmatpush1.msra.mxu0 0.0
    %109 = vmatprep.subr.mxu0 0.0
    %110 = vmatpush1.msra.mxu0 0.0
    %111 = vmatprep.subr.mxu0 0.0
    %112 = vmatpush1.msra.mxu0 0.0
    %113 = vmatprep.subr.mxu0 0.0
    %114 = vmatpush1.msra.mxu0 0.0
    %115 = vmatprep.subr.mxu0 0.0
    %116 = vmatpush1.msra.mxu0 0.0
    %117 = vmatprep.subr.mxu0 0.0
    %118 = vmatpush1.msra.mxu0 0.0
    %119 = vmatprep.subr.mxu0 0.0
    %120 = vmatpush1.msra.mxu0 0.0
    %121 = vmatprep.subr.mxu0 0.0
    %122 = vmatpush1.msra.mxu0 0.0
    %123 = vmatprep.mubr.f32.mxu0 0.0
    %124 = vmatmul.mubr.f32.gmra.mrb[0].mxu0 %v57
    %v125 = vpop.f32.mrb[0].mxu0
    %v126 = vadd.f32 %v53, %v125
    %v127 = vpop.f32.mrb[0].mxu0
    %v128 = vadd.f32 %v53, %v127
    %129 = vdwg.mxu0
    %v130 = vmax.f32 %v126, 0.0
    %v131 = vmax.f32 %v128, 0.0
    %s132 = scalar_lea.vmem [#allocation5], 192
    %v133 = vld [vmem:[%s132] sm:$0xff]
    %v134 = vld [vmem:[%s132 + $0x8] sm:$0xff]
    %v135 = vmul.f32 %v130, %v133
    %v136 = vmul.f32 %v131, %v134
    %137 = vrot.lane.b32.xlu0 %v130, 34
    %v138 = vpop.permute.xlu0 %137
    %139 = vrot.lane.b32.xlu0 %v131, 34
    %v140 = vpop.permute.xlu0 %139
    %v141 = vlaneseq
    %v142 = vand.u32 %v141, 127
    %vm143 = vcmp.lt.s32.totalorder %v142, 34
    %v144 = vsel %vm143, %v138, %v140
    %v145 = vsel %vm143, %v140, %v138
    %v146 = vld [vmem:[#allocation5] sm:$0xff]
    %v147 = vld [vmem:[#allocation5 + $0x8] sm:$0xff]
    %v148 = vmul.f32 %v145, %v146
    %v149 = vmul.f32 %v144, %v147
    %v150 = vadd.f32 %v135, %v148
    %v151 = vadd.f32 %v136, %v149
    %152 = vrot.lane.b32.xlu0 %v130, 33
    %v153 = vpop.permute.xlu0 %152
    %154 = vrot.lane.b32.xlu0 %v131, 33
    %v155 = vpop.permute.xlu0 %154
    %vm156 = vcmp.lt.s32.totalorder %v142, 33
    %v157 = vsel %vm156, %v153, %v155
    %v158 = vsel %vm156, %v155, %v153
    %s159 = scalar_lea.vmem [#allocation5], 16
    %v160 = vld [vmem:[%s159] sm:$0xff]
    %v161 = vld [vmem:[%s159 + $0x8] sm:$0xff]
    %v162 = vmul.f32 %v158, %v160
    %v163 = vmul.f32 %v157, %v161
    %v164 = vadd.f32 %v150, %v162
    %v165 = vadd.f32 %v151, %v163
    %166 = vrot.lane.b32.xlu0 %v130, 32
    %v167 = vpop.permute.xlu0 %166
    %168 = vrot.lane.b32.xlu0 %v131, 32
    %v169 = vpop.permute.xlu0 %168
    %vm170 = vcmp.lt.s32.totalorder %v142, 32
    %v171 = vsel %vm170, %v167, %v169
    %v172 = vsel %vm170, %v169, %v167
    %s173 = scalar_lea.vmem [#allocation5], 32
    %v174 = vld [vmem:[%s173] sm:$0xff]
    %v175 = vld [vmem:[%s173 + $0x8] sm:$0xff]
    %v176 = vmul.f32 %v172, %v174
    %v177 = vmul.f32 %v171, %v175
    %v178 = vadd.f32 %v164, %v176
    %v179 = vadd.f32 %v165, %v177
    %180 = vrot.lane.b32.xlu0 %v130, 31
    %v181 = vpop.permute.xlu0 %180
    %182 = vrot.lane.b32.xlu0 %v131, 31
    %v183 = vpop.permute.xlu0 %182
    %vm184 = vcmp.lt.s32.totalorder %v142, 31
    %v185 = vsel %vm184, %v181, %v183
    %v186 = vsel %vm184, %v183, %v181
    %s187 = scalar_lea.vmem [#allocation5], 48
    %v188 = vld [vmem:[%s187] sm:$0xff]
    %v189 = vld [vmem:[%s187 + $0x8] sm:$0xff]
    %v190 = vmul.f32 %v186, %v188
    %v191 = vmul.f32 %v185, %v189
    %v192 = vadd.f32 %v178, %v190
    %v193 = vadd.f32 %v179, %v191
    %194 = vrot.lane.b32.xlu0 %v130, 30
    %v195 = vpop.permute.xlu0 %194
    %196 = vrot.lane.b32.xlu0 %v131, 30
    %v197 = vpop.permute.xlu0 %196
    %vm198 = vcmp.lt.s32.totalorder %v142, 30
    %v199 = vsel %vm198, %v195, %v197
    %v200 = vsel %vm198, %v197, %v195
    %s201 = scalar_lea.vmem [#allocation5], 64
    %v202 = vld [vmem:[%s201] sm:$0xff]
    %v203 = vld [vmem:[%s201 + $0x8] sm:$0xff]
    %v204 = vmul.f32 %v200, %v202
    %v205 = vmul.f32 %v199, %v203
    %v206 = vadd.f32 %v192, %v204
    %v207 = vadd.f32 %v193, %v205
    %208 = vrot.lane.b32.xlu0 %v130, 18
    %v209 = vpop.permute.xlu0 %208
    %210 = vrot.lane.b32.xlu0 %v131, 18
    %v211 = vpop.permute.xlu0 %210
    %vm212 = vcmp.lt.s32.totalorder %v142, 18
    %v213 = vsel %vm212, %v209, %v211
    %v214 = vsel %vm212, %v211, %v209
    %s215 = scalar_lea.vmem [#allocation5], 80
    %v216 = vld [vmem:[%s215] sm:$0xff]
    %v217 = vld [vmem:[%s215 + $0x8] sm:$0xff]
    %v218 = vmul.f32 %v214, %v216
    %v219 = vmul.f32 %v213, %v217
    %v220 = vadd.f32 %v206, %v218
    %v221 = vadd.f32 %v207, %v219
    %222 = vrot.lane.b32.xlu0 %v130, 17
    %v223 = vpop.permute.xlu0 %222
    %224 = vrot.lane.b32.xlu0 %v131, 17
    %v225 = vpop.permute.xlu0 %224
    %vm226 = vcmp.lt.s32.totalorder %v142, 17
    %v227 = vsel %vm226, %v223, %v225
    %v228 = vsel %vm226, %v225, %v223
    %s229 = scalar_lea.vmem [#allocation5], 96
    %v230 = vld [vmem:[%s229] sm:$0xff]
    %v231 = vld [vmem:[%s229 + $0x8] sm:$0xff]
    %v232 = vmul.f32 %v228, %v230
    %v233 = vmul.f32 %v227, %v231
    %v234 = vadd.f32 %v220, %v232
    %v235 = vadd.f32 %v221, %v233
    %236 = vrot.lane.b32.xlu0 %v130, 16
    %v237 = vpop.permute.xlu0 %236
    %238 = vrot.lane.b32.xlu0 %v131, 16
    %v239 = vpop.permute.xlu0 %238
    %vm240 = vcmp.lt.s32.totalorder %v142, 16
    %v241 = vsel %vm240, %v237, %v239
    %v242 = vsel %vm240, %v239, %v237
    %s243 = scalar_lea.vmem [#allocation5], 112
    %v244 = vld [vmem:[%s243] sm:$0xff]
    %v245 = vld [vmem:[%s243 + $0x8] sm:$0xff]
    %v246 = vmul.f32 %v242, %v244
    %v247 = vmul.f32 %v241, %v245
    %v248 = vadd.f32 %v234, %v246
    %v249 = vadd.f32 %v235, %v247
    %250 = vrot.lane.b32.xlu0 %v130, 15
    %v251 = vpop.permute.xlu0 %250
    %252 = vrot.lane.b32.xlu0 %v131, 15
    %v253 = vpop.permute.xlu0 %252
    %vm254 = vcmp.lt.s32.totalorder %v142, 15
    %v255 = vsel %vm254, %v251, %v253
    %v256 = vsel %vm254, %v253, %v251
    %s257 = scalar_lea.vmem [#allocation5], 128
    %v258 = vld [vmem:[%s257] sm:$0xff]
    %v259 = vld [vmem:[%s257 + $0x8] sm:$0xff]
    %v260 = vmul.f32 %v256, %v258
    %v261 = vmul.f32 %v255, %v259
    %v262 = vadd.f32 %v248, %v260
    %v263 = vadd.f32 %v249, %v261
    %264 = vrot.lane.b32.xlu0 %v130, 14
    %v265 = vpop.permute.xlu0 %264
    %266 = vrot.lane.b32.xlu0 %v131, 14
    %v267 = vpop.permute.xlu0 %266
    %vm268 = vcmp.lt.s32.totalorder %v142, 14
    %v269 = vsel %vm268, %v265, %v267
    %v270 = vsel %vm268, %v267, %v265
    %s271 = scalar_lea.vmem [#allocation5], 144
    %v272 = vld [vmem:[%s271] sm:$0xff]
    %v273 = vld [vmem:[%s271 + $0x8] sm:$0xff]
    %v274 = vmul.f32 %v270, %v272
    %v275 = vmul.f32 %v269, %v273
    %v276 = vadd.f32 %v262, %v274
    %v277 = vadd.f32 %v263, %v275
    %278 = vrot.lane.b32.xlu0 %v130, 2
    %v279 = vpop.permute.xlu0 %278
    %280 = vrot.lane.b32.xlu0 %v131, 2
    %v281 = vpop.permute.xlu0 %280
    %vm282 = vcmp.lt.s32.totalorder %v142, 2
    %v283 = vsel %vm282, %v279, %v281
    %v284 = vsel %vm282, %v281, %v279
    %s285 = scalar_lea.vmem [#allocation5], 160
    %v286 = vld [vmem:[%s285] sm:$0xff]
    %v287 = vld [vmem:[%s285 + $0x8] sm:$0xff]
    %v288 = vmul.f32 %v284, %v286
    %v289 = vmul.f32 %v283, %v287
    %v290 = vadd.f32 %v276, %v288
    %v291 = vadd.f32 %v277, %v289
    %292 = vrot.lane.b32.xlu0 %v130, 1
    %v293 = vpop.permute.xlu0 %292
    %294 = vrot.lane.b32.xlu0 %v131, 1
    %v295 = vpop.permute.xlu0 %294
    %vm296 = vcmp.lt.s32.totalorder %v142, 1
    %v297 = vsel %vm296, %v293, %v295
    %v298 = vsel %vm296, %v295, %v293
    %s299 = scalar_lea.vmem [#allocation5], 176
    %v300 = vld [vmem:[%s299] sm:$0xff]
    %v301 = vld [vmem:[%s299 + $0x8] sm:$0xff]
    %v302 = vmul.f32 %v298, %v300
    %v303 = vmul.f32 %v297, %v301
    %v304 = vadd.f32 %v290, %v302
    %v305 = vadd.f32 %v291, %v303
    %306 = vrot.lane.b32.xlu0 %v130, 127
    %v307 = vpop.permute.xlu0 %306
    %308 = vrot.lane.b32.xlu0 %v131, 127
    %v309 = vpop.permute.xlu0 %308
    %vm310 = vcmp.lt.s32.totalorder %v142, 127
    %v311 = vsel %vm310, %v307, %v309
    %v312 = vsel %vm310, %v309, %v307
    %s313 = scalar_lea.vmem [#allocation5], 208
    %v314 = vld [vmem:[%s313] sm:$0xff]
    %v315 = vld [vmem:[%s313 + $0x8] sm:$0xff]
    %v316 = vmul.f32 %v311, %v314
    %v317 = vmul.f32 %v312, %v315
    %v318 = vadd.f32 %v304, %v316
    %v319 = vadd.f32 %v305, %v317
    %320 = vrot.lane.b32.xlu0 %v130, 126
    %v321 = vpop.permute.xlu0 %320
    %322 = vrot.lane.b32.xlu0 %v131, 126
    %v323 = vpop.permute.xlu0 %322
    %vm324 = vcmp.lt.s32.totalorder %v142, 126
    %v325 = vsel %vm324, %v321, %v323
    %v326 = vsel %vm324, %v323, %v321
    %s327 = scalar_lea.vmem [#allocation5], 224
    %v328 = vld [vmem:[%s327] sm:$0xff]
    %v329 = vld [vmem:[%s327 + $0x8] sm:$0xff]
    %v330 = vmul.f32 %v325, %v328
    %v331 = vmul.f32 %v326, %v329
    %v332 = vadd.f32 %v318, %v330
    %v333 = vadd.f32 %v319, %v331
    %334 = vrot.lane.b32.xlu0 %v130, 114
    %v335 = vpop.permute.xlu0 %334
    %336 = vrot.lane.b32.xlu0 %v131, 114
    %v337 = vpop.permute.xlu0 %336
    %vm338 = vcmp.lt.s32.totalorder %v142, 114
    %v339 = vsel %vm338, %v335, %v337
    %v340 = vsel %vm338, %v337, %v335
    %s341 = scalar_lea.vmem [#allocation5], 240
    %v342 = vld [vmem:[%s341] sm:$0xff]
    %v343 = vld [vmem:[%s341 + $0x8] sm:$0xff]
    %v344 = vmul.f32 %v339, %v342
    %v345 = vmul.f32 %v340, %v343
    %v346 = vadd.f32 %v332, %v344
    %v347 = vadd.f32 %v333, %v345
    %348 = vrot.lane.b32.xlu0 %v130, 113
    %v349 = vpop.permute.xlu0 %348
    %350 = vrot.lane.b32.xlu0 %v131, 113
    %v351 = vpop.permute.xlu0 %350
    %vm352 = vcmp.lt.s32.totalorder %v142, 113
    %v353 = vsel %vm352, %v349, %v351
    %v354 = vsel %vm352, %v351, %v349
    %s355 = scalar_lea.vmem [#allocation5], 256
    %v356 = vld [vmem:[%s355] sm:$0xff]
    %v357 = vld [vmem:[%s355 + $0x8] sm:$0xff]
    %v358 = vmul.f32 %v353, %v356
    %v359 = vmul.f32 %v354, %v357
    %v360 = vadd.f32 %v346, %v358
    %v361 = vadd.f32 %v347, %v359
    %362 = vrot.lane.b32.xlu0 %v130, 112
    %v363 = vpop.permute.xlu0 %362
    %364 = vrot.lane.b32.xlu0 %v131, 112
    %v365 = vpop.permute.xlu0 %364
    %vm366 = vcmp.lt.s32.totalorder %v142, 112
    %v367 = vsel %vm366, %v363, %v365
    %v368 = vsel %vm366, %v365, %v363
    %s369 = scalar_lea.vmem [#allocation5], 272
    %v370 = vld [vmem:[%s369] sm:$0xff]
    %v371 = vld [vmem:[%s369 + $0x8] sm:$0xff]
    %v372 = vmul.f32 %v367, %v370
    %v373 = vmul.f32 %v368, %v371
    %v374 = vadd.f32 %v360, %v372
    %v375 = vadd.f32 %v361, %v373
    %376 = vrot.lane.b32.xlu0 %v130, 111
    %v377 = vpop.permute.xlu0 %376
    %378 = vrot.lane.b32.xlu0 %v131, 111
    %v379 = vpop.permute.xlu0 %378
    %vm380 = vcmp.lt.s32.totalorder %v142, 111
    %v381 = vsel %vm380, %v377, %v379
    %v382 = vsel %vm380, %v379, %v377
    %s383 = scalar_lea.vmem [#allocation5], 288
    %v384 = vld [vmem:[%s383] sm:$0xff]
    %v385 = vld [vmem:[%s383 + $0x8] sm:$0xff]
    %v386 = vmul.f32 %v381, %v384
    %v387 = vmul.f32 %v382, %v385
    %v388 = vadd.f32 %v374, %v386
    %v389 = vadd.f32 %v375, %v387
    %390 = vrot.lane.b32.xlu0 %v130, 110
    %v391 = vpop.permute.xlu0 %390
    %392 = vrot.lane.b32.xlu0 %v131, 110
    %v393 = vpop.permute.xlu0 %392
    %vm394 = vcmp.lt.s32.totalorder %v142, 110
    %v395 = vsel %vm394, %v391, %v393
    %v396 = vsel %vm394, %v393, %v391
    %s397 = scalar_lea.vmem [#allocation5], 304
    %v398 = vld [vmem:[%s397] sm:$0xff]
    %v399 = vld [vmem:[%s397 + $0x8] sm:$0xff]
    %v400 = vmul.f32 %v395, %v398
    %v401 = vmul.f32 %v396, %v399
    %v402 = vadd.f32 %v388, %v400
    %v403 = vadd.f32 %v389, %v401
    %404 = vrot.lane.b32.xlu0 %v130, 98
    %v405 = vpop.permute.xlu0 %404
    %406 = vrot.lane.b32.xlu0 %v131, 98
    %v407 = vpop.permute.xlu0 %406
    %vm408 = vcmp.lt.s32.totalorder %v142, 98
    %v409 = vsel %vm408, %v405, %v407
    %v410 = vsel %vm408, %v407, %v405
    %s411 = scalar_lea.vmem [#allocation5], 320
    %v412 = vld [vmem:[%s411] sm:$0xff]
    %v413 = vld [vmem:[%s411 + $0x8] sm:$0xff]
    %v414 = vmul.f32 %v409, %v412
    %v415 = vmul.f32 %v410, %v413
    %v416 = vadd.f32 %v402, %v414
    %v417 = vadd.f32 %v403, %v415
    %418 = vrot.lane.b32.xlu0 %v130, 97
    %v419 = vpop.permute.xlu0 %418
    %420 = vrot.lane.b32.xlu0 %v131, 97
    %v421 = vpop.permute.xlu0 %420
    %vm422 = vcmp.lt.s32.totalorder %v142, 97
    %v423 = vsel %vm422, %v419, %v421
    %v424 = vsel %vm422, %v421, %v419
    %s425 = scalar_lea.vmem [#allocation5], 336
    %v426 = vld [vmem:[%s425] sm:$0xff]
    %v427 = vld [vmem:[%s425 + $0x8] sm:$0xff]
    %v428 = vmul.f32 %v423, %v426
    %v429 = vmul.f32 %v424, %v427
    %v430 = vadd.f32 %v416, %v428
    %v431 = vadd.f32 %v417, %v429
    %432 = vrot.lane.b32.xlu0 %v130, 96
    %v433 = vpop.permute.xlu0 %432
    %434 = vrot.lane.b32.xlu0 %v131, 96
    %v435 = vpop.permute.xlu0 %434
    %vm436 = vcmp.lt.s32.totalorder %v142, 96
    %v437 = vsel %vm436, %v433, %v435
    %v438 = vsel %vm436, %v435, %v433
    %s439 = scalar_lea.vmem [#allocation5], 352
    %v440 = vld [vmem:[%s439] sm:$0xff]
    %v441 = vld [vmem:[%s439 + $0x8] sm:$0xff]
    %v442 = vmul.f32 %v437, %v440
    %v443 = vmul.f32 %v438, %v441
    %v444 = vadd.f32 %v430, %v442
    %v445 = vadd.f32 %v431, %v443
    %446 = vrot.lane.b32.xlu0 %v130, 95
    %v447 = vpop.permute.xlu0 %446
    %448 = vrot.lane.b32.xlu0 %v131, 95
    %v449 = vpop.permute.xlu0 %448
    %vm450 = vcmp.lt.s32.totalorder %v142, 95
    %v451 = vsel %vm450, %v447, %v449
    %v452 = vsel %vm450, %v449, %v447
    %s453 = scalar_lea.vmem [#allocation5], 368
    %v454 = vld [vmem:[%s453] sm:$0xff]
    %v455 = vld [vmem:[%s453 + $0x8] sm:$0xff]
    %v456 = vmul.f32 %v451, %v454
    %v457 = vmul.f32 %v452, %v455
    %v458 = vadd.f32 %v444, %v456
    %v459 = vadd.f32 %v445, %v457
    %460 = vrot.lane.b32.xlu0 %v130, 94
    %v461 = vpop.permute.xlu0 %460
    %462 = vrot.lane.b32.xlu0 %v131, 94
    %v463 = vpop.permute.xlu0 %462
    %vm464 = vcmp.lt.s32.totalorder %v142, 94
    %v465 = vsel %vm464, %v461, %v463
    %v466 = vsel %vm464, %v463, %v461
    %s467 = scalar_lea.vmem [#allocation5], 384
    %v468 = vld [vmem:[%s467] sm:$0xff]
    %v469 = vld [vmem:[%s467 + $0x8] sm:$0xff]
    %v470 = vmul.f32 %v465, %v468
    %v471 = vmul.f32 %v466, %v469
    %v472 = vadd.f32 %v458, %v470
    %v473 = vadd.f32 %v459, %v471
    %474 = vst [vmem:[#allocation7] sm:$0xff] %v472
    %475 = vst [vmem:[#allocation7 + $0x8] sm:$0xff] %v473
    %s476 = scalar_lea.vmem [#allocation2], 16
    %v477 = vld [vmem:[%s476] sm:$0xff]
    %v478 = vld [vmem:[%s476 + $0x8] sm:$0xff]
    %479 = vmatprep.subr.mxu0 %v478
    %480 = vmatpush1.msra.mxu0 %v477
    %481 = vmatprep.subr.mxu0 0.0
    %482 = vmatpush1.msra.mxu0 0.0
    %483 = vmatprep.subr.mxu0 0.0
    %484 = vmatpush1.msra.mxu0 0.0
    %485 = vmatprep.subr.mxu0 0.0
    %486 = vmatpush1.msra.mxu0 0.0
    %487 = vmatprep.subr.mxu0 0.0
    %488 = vmatpush1.msra.mxu0 0.0
    %489 = vmatprep.subr.mxu0 0.0
    %490 = vmatpush1.msra.mxu0 0.0
    %491 = vmatprep.subr.mxu0 0.0
    %492 = vmatpush1.msra.mxu0 0.0
    %493 = vmatprep.subr.mxu0 0.0
    %494 = vmatpush1.msra.mxu0 0.0
    %495 = vmatprep.subr.mxu0 0.0
    %496 = vmatpush1.msra.mxu0 0.0
    %497 = vmatprep.subr.mxu0 0.0
    %498 = vmatpush1.msra.mxu0 0.0
    %499 = vmatprep.subr.mxu0 0.0
    %500 = vmatpush1.msra.mxu0 0.0
    %501 = vmatprep.subr.mxu0 0.0
    %502 = vmatpush1.msra.mxu0 0.0
    %503 = vmatprep.subr.mxu0 0.0
    %504 = vmatpush1.msra.mxu0 0.0
    %505 = vmatprep.subr.mxu0 0.0
    %506 = vmatpush1.msra.mxu0 0.0
    %507 = vmatprep.subr.mxu0 0.0
    %508 = vmatpush1.msra.mxu0 0.0
    %509 = vmatprep.subr.mxu0 0.0
    %510 = vmatpush1.msra.mxu0 0.0
    %511 = vmatprep.subr.mxu0 0.0
    %512 = vmatpush1.msra.mxu0 0.0
    %513 = vmatprep.subr.mxu0 0.0
    %514 = vmatpush1.msra.mxu0 0.0
    %515 = vmatprep.subr.mxu0 0.0
    %516 = vmatpush1.msra.mxu0 0.0
    %517 = vmatprep.subr.mxu0 0.0
    %518 = vmatpush1.msra.mxu0 0.0
    %519 = vmatprep.subr.mxu0 0.0
    %520 = vmatpush1.msra.mxu0 0.0
    %521 = vmatprep.subr.mxu0 0.0
    %522 = vmatpush1.msra.mxu0 0.0
    %523 = vmatprep.subr.mxu0 0.0
    %524 = vmatpush1.msra.mxu0 0.0
    %525 = vmatprep.subr.mxu0 0.0
    %526 = vmatpush1.msra.mxu0 0.0
    %527 = vmatprep.subr.mxu0 0.0
    %528 = vmatpush1.msra.mxu0 0.0
    %529 = vmatprep.subr.mxu0 0.0
    %530 = vmatpush1.msra.mxu0 0.0
    %531 = vmatprep.subr.mxu0 0.0
    %532 = vmatpush1.msra.mxu0 0.0
    %533 = vmatprep.subr.mxu0 0.0
    %534 = vmatpush1.msra.mxu0 0.0
    %535 = vmatprep.subr.mxu0 0.0
    %536 = vmatpush1.msra.mxu0 0.0
    %537 = vmatprep.subr.mxu0 0.0
    %538 = vmatpush1.msra.mxu0 0.0
    %539 = vmatprep.subr.mxu0 0.0
    %540 = vmatpush1.msra.mxu0 0.0
    %541 = vmatprep.subr.mxu0 0.0
    %542 = vmatpush1.msra.mxu0 0.0
    %543 = vmatprep.mubr.f32.mxu0 0.0
    %544 = vmatmul.mubr.f32.gmra.mrb[0].mxu0 %v57
    %v545 = vpop.f32.mrb[0].mxu0
    %v546 = vadd.f32 %v53, %v545
    %v547 = vpop.f32.mrb[0].mxu0
    %v548 = vadd.f32 %v53, %v547
    %549 = vdwg.mxu0
    %v550 = vmax.f32 %v546, 0.0
    %v551 = vmax.f32 %v548, 0.0
    %v552 = vld [vmem:[%s132] sm:$0xff]
    %v553 = vld [vmem:[%s132 + $0x8] sm:$0xff]
    %v554 = vmul.f32 %v550, %v552
    %v555 = vmul.f32 %v551, %v553
    %556 = vrot.lane.b32.xlu0 %v550, 34
    %v557 = vpop.permute.xlu0 %556
    %558 = vrot.lane.b32.xlu0 %v551, 34
    %v559 = vpop.permute.xlu0 %558
    %v560 = vsel %vm143, %v557, %v559
    %v561 = vsel %vm143, %v559, %v557
    %v562 = vld [vmem:[#allocation5] sm:$0xff]
    %v563 = vld [vmem:[#allocation5 + $0x8] sm:$0xff]
    %v564 = vmul.f32 %v561, %v562
    %v565 = vmul.f32 %v560, %v563
    %v566 = vadd.f32 %v554, %v564
    %v567 = vadd.f32 %v555, %v565
    %568 = vrot.lane.b32.xlu0 %v550, 33
    %v569 = vpop.permute.xlu0 %568
    %570 = vrot.lane.b32.xlu0 %v551, 33
    %v571 = vpop.permute.xlu0 %570
    %v572 = vsel %vm156, %v569, %v571
    %v573 = vsel %vm156, %v571, %v569
    %v574 = vld [vmem:[%s159] sm:$0xff]
    %v575 = vld [vmem:[%s159 + $0x8] sm:$0xff]
    %v576 = vmul.f32 %v573, %v574
    %v577 = vmul.f32 %v572, %v575
    %v578 = vadd.f32 %v566, %v576
    %v579 = vadd.f32 %v567, %v577
    %580 = vrot.lane.b32.xlu0 %v550, 32
    %v581 = vpop.permute.xlu0 %580
    %582 = vrot.lane.b32.xlu0 %v551, 32
    %v583 = vpop.permute.xlu0 %582
    %v584 = vsel %vm170, %v581, %v583
    %v585 = vsel %vm170, %v583, %v581
    %v586 = vld [vmem:[%s173] sm:$0xff]
    %v587 = vld [vmem:[%s173 + $0x8] sm:$0xff]
    %v588 = vmul.f32 %v585, %v586
    %v589 = vmul.f32 %v584, %v587
    %v590 = vadd.f32 %v578, %v588
    %v591 = vadd.f32 %v579, %v589
    %592 = vrot.lane.b32.xlu0 %v550, 31
    %v593 = vpop.permute.xlu0 %592
    %594 = vrot.lane.b32.xlu0 %v551, 31
    %v595 = vpop.permute.xlu0 %594
    %v596 = vsel %vm184, %v593, %v595
    %v597 = vsel %vm184, %v595, %v593
    %v598 = vld [vmem:[%s187] sm:$0xff]
    %v599 = vld [vmem:[%s187 + $0x8] sm:$0xff]
    %v600 = vmul.f32 %v597, %v598
    %v601 = vmul.f32 %v596, %v599
    %v602 = vadd.f32 %v590, %v600
    %v603 = vadd.f32 %v591, %v601
    %604 = vrot.lane.b32.xlu0 %v550, 30
    %v605 = vpop.permute.xlu0 %604
    %606 = vrot.lane.b32.xlu0 %v551, 30
    %v607 = vpop.permute.xlu0 %606
    %v608 = vsel %vm198, %v605, %v607
    %v609 = vsel %vm198, %v607, %v605
    %v610 = vld [vmem:[%s201] sm:$0xff]
    %v611 = vld [vmem:[%s201 + $0x8] sm:$0xff]
    %v612 = vmul.f32 %v609, %v610
    %v613 = vmul.f32 %v608, %v611
    %v614 = vadd.f32 %v602, %v612
    %v615 = vadd.f32 %v603, %v613
    %616 = vrot.lane.b32.xlu0 %v550, 18
    %v617 = vpop.permute.xlu0 %616
    %618 = vrot.lane.b32.xlu0 %v551, 18
    %v619 = vpop.permute.xlu0 %618
    %v620 = vsel %vm212, %v617, %v619
    %v621 = vsel %vm212, %v619, %v617
    %v622 = vld [vmem:[%s215] sm:$0xff]
    %v623 = vld [vmem:[%s215 + $0x8] sm:$0xff]
    %v624 = vmul.f32 %v621, %v622
    %v625 = vmul.f32 %v620, %v623
    %v626 = vadd.f32 %v614, %v624
    %v627 = vadd.f32 %v615, %v625
    %628 = vrot.lane.b32.xlu0 %v550, 17
    %v629 = vpop.permute.xlu0 %628
    %630 = vrot.lane.b32.xlu0 %v551, 17
    %v631 = vpop.permute.xlu0 %630
    %v632 = vsel %vm226, %v629, %v631
    %v633 = vsel %vm226, %v631, %v629
    %v634 = vld [vmem:[%s229] sm:$0xff]
    %v635 = vld [vmem:[%s229 + $0x8] sm:$0xff]
    %v636 = vmul.f32 %v633, %v634
    %v637 = vmul.f32 %v632, %v635
    %v638 = vadd.f32 %v626, %v636
    %v639 = vadd.f32 %v627, %v637
    %640 = vrot.lane.b32.xlu0 %v550, 16
    %v641 = vpop.permute.xlu0 %640
    %642 = vrot.lane.b32.xlu0 %v551, 16
    %v643 = vpop.permute.xlu0 %642
    %v644 = vsel %vm240, %v641, %v643
    %v645 = vsel %vm240, %v643, %v641
    %v646 = vld [vmem:[%s243] sm:$0xff]
    %v647 = vld [vmem:[%s243 + $0x8] sm:$0xff]
    %v648 = vmul.f32 %v645, %v646
    %v649 = vmul.f32 %v644, %v647
    %v650 = vadd.f32 %v638, %v648
    %v651 = vadd.f32 %v639, %v649
    %652 = vrot.lane.b32.xlu0 %v550, 15
    %v653 = vpop.permute.xlu0 %652
    %654 = vrot.lane.b32.xlu0 %v551, 15
    %v655 = vpop.permute.xlu0 %654
    %v656 = vsel %vm254, %v653, %v655
    %v657 = vsel %vm254, %v655, %v653
    %v658 = vld [vmem:[%s257] sm:$0xff]
    %v659 = vld [vmem:[%s257 + $0x8] sm:$0xff]
    %v660 = vmul.f32 %v657, %v658
    %v661 = vmul.f32 %v656, %v659
    %v662 = vadd.f32 %v650, %v660
    %v663 = vadd.f32 %v651, %v661
    %664 = vrot.lane.b32.xlu0 %v550, 14
    %v665 = vpop.permute.xlu0 %664
    %666 = vrot.lane.b32.xlu0 %v551, 14
    %v667 = vpop.permute.xlu0 %666
    %v668 = vsel %vm268, %v665, %v667
    %v669 = vsel %vm268, %v667, %v665
    %v670 = vld [vmem:[%s271] sm:$0xff]
    %v671 = vld [vmem:[%s271 + $0x8] sm:$0xff]
    %v672 = vmul.f32 %v669, %v670
    %v673 = vmul.f32 %v668, %v671
    %v674 = vadd.f32 %v662, %v672
    %v675 = vadd.f32 %v663, %v673
    %676 = vrot.lane.b32.xlu0 %v550, 2
    %v677 = vpop.permute.xlu0 %676
    %678 = vrot.lane.b32.xlu0 %v551, 2
    %v679 = vpop.permute.xlu0 %678
    %v680 = vsel %vm282, %v677, %v679
    %v681 = vsel %vm282, %v679, %v677
    %v682 = vld [vmem:[%s285] sm:$0xff]
    %v683 = vld [vmem:[%s285 + $0x8] sm:$0xff]
    %v684 = vmul.f32 %v681, %v682
    %v685 = vmul.f32 %v680, %v683
    %v686 = vadd.f32 %v674, %v684
    %v687 = vadd.f32 %v675, %v685
    %688 = vrot.lane.b32.xlu0 %v550, 1
    %v689 = vpop.permute.xlu0 %688
    %690 = vrot.lane.b32.xlu0 %v551, 1
    %v691 = vpop.permute.xlu0 %690
    %v692 = vsel %vm296, %v689, %v691
    %v693 = vsel %vm296, %v691, %v689
    %v694 = vld [vmem:[%s299] sm:$0xff]
    %v695 = vld [vmem:[%s299 + $0x8] sm:$0xff]
    %v696 = vmul.f32 %v693, %v694
    %v697 = vmul.f32 %v692, %v695
    %v698 = vadd.f32 %v686, %v696
    %v699 = vadd.f32 %v687, %v697
    %700 = vrot.lane.b32.xlu0 %v550, 127
    %v701 = vpop.permute.xlu0 %700
    %702 = vrot.lane.b32.xlu0 %v551, 127
    %v703 = vpop.permute.xlu0 %702
    %v704 = vsel %vm310, %v701, %v703
    %v705 = vsel %vm310, %v703, %v701
    %v706 = vld [vmem:[%s313] sm:$0xff]
    %v707 = vld [vmem:[%s313 + $0x8] sm:$0xff]
    %v708 = vmul.f32 %v704, %v706
    %v709 = vmul.f32 %v705, %v707
    %v710 = vadd.f32 %v698, %v708
    %v711 = vadd.f32 %v699, %v709
    %712 = vrot.lane.b32.xlu0 %v550, 126
    %v713 = vpop.permute.xlu0 %712
    %714 = vrot.lane.b32.xlu0 %v551, 126
    %v715 = vpop.permute.xlu0 %714
    %v716 = vsel %vm324, %v713, %v715
    %v717 = vsel %vm324, %v715, %v713
    %v718 = vld [vmem:[%s327] sm:$0xff]
    %v719 = vld [vmem:[%s327 + $0x8] sm:$0xff]
    %v720 = vmul.f32 %v716, %v718
    %v721 = vmul.f32 %v717, %v719
    %v722 = vadd.f32 %v710, %v720
    %v723 = vadd.f32 %v711, %v721
    %724 = vrot.lane.b32.xlu0 %v550, 114
    %v725 = vpop.permute.xlu0 %724
    %726 = vrot.lane.b32.xlu0 %v551, 114
    %v727 = vpop.permute.xlu0 %726
    %v728 = vsel %vm338, %v725, %v727
    %v729 = vsel %vm338, %v727, %v725
    %v730 = vld [vmem:[%s341] sm:$0xff]
    %v731 = vld [vmem:[%s341 + $0x8] sm:$0xff]
    %v732 = vmul.f32 %v728, %v730
    %v733 = vmul.f32 %v729, %v731
    %v734 = vadd.f32 %v722, %v732
    %v735 = vadd.f32 %v723, %v733
    %736 = vrot.lane.b32.xlu0 %v550, 113
    %v737 = vpop.permute.xlu0 %736
    %738 = vrot.lane.b32.xlu0 %v551, 113
    %v739 = vpop.permute.xlu0 %738
    %v740 = vsel %vm352, %v737, %v739
    %v741 = vsel %vm352, %v739, %v737
    %v742 = vld [vmem:[%s355] sm:$0xff]
    %v743 = vld [vmem:[%s355 + $0x8] sm:$0xff]
    %v744 = vmul.f32 %v740, %v742
    %v745 = vmul.f32 %v741, %v743
    %v746 = vadd.f32 %v734, %v744
    %v747 = vadd.f32 %v735, %v745
    %748 = vrot.lane.b32.xlu0 %v550, 112
    %v749 = vpop.permute.xlu0 %748
    %750 = vrot.lane.b32.xlu0 %v551, 112
    %v751 = vpop.permute.xlu0 %750
    %v752 = vsel %vm366, %v749, %v751
    %v753 = vsel %vm366, %v751, %v749
    %v754 = vld [vmem:[%s369] sm:$0xff]
    %v755 = vld [vmem:[%s369 + $0x8] sm:$0xff]
    %v756 = vmul.f32 %v752, %v754
    %v757 = vmul.f32 %v753, %v755
    %v758 = vadd.f32 %v746, %v756
    %v759 = vadd.f32 %v747, %v757
    %760 = vrot.lane.b32.xlu0 %v550, 111
    %v761 = vpop.permute.xlu0 %760
    %762 = vrot.lane.b32.xlu0 %v551, 111
    %v763 = vpop.permute.xlu0 %762
    %v764 = vsel %vm380, %v761, %v763
    %v765 = vsel %vm380, %v763, %v761
    %v766 = vld [vmem:[%s383] sm:$0xff]
    %v767 = vld [vmem:[%s383 + $0x8] sm:$0xff]
    %v768 = vmul.f32 %v764, %v766
    %v769 = vmul.f32 %v765, %v767
    %v770 = vadd.f32 %v758, %v768
    %v771 = vadd.f32 %v759, %v769
    %772 = vrot.lane.b32.xlu0 %v550, 110
    %v773 = vpop.permute.xlu0 %772
    %774 = vrot.lane.b32.xlu0 %v551, 110
    %v775 = vpop.permute.xlu0 %774
    %v776 = vsel %vm394, %v773, %v775
    %v777 = vsel %vm394, %v775, %v773
    %v778 = vld [vmem:[%s397] sm:$0xff]
    %v779 = vld [vmem:[%s397 + $0x8] sm:$0xff]
    %v780 = vmul.f32 %v776, %v778
    %v781 = vmul.f32 %v777, %v779
    %v782 = vadd.f32 %v770, %v780
    %v783 = vadd.f32 %v771, %v781
    %784 = vrot.lane.b32.xlu0 %v550, 98
    %v785 = vpop.permute.xlu0 %784
    %786 = vrot.lane.b32.xlu0 %v551, 98
    %v787 = vpop.permute.xlu0 %786
    %v788 = vsel %vm408, %v785, %v787
    %v789 = vsel %vm408, %v787, %v785
    %v790 = vld [vmem:[%s411] sm:$0xff]
    %v791 = vld [vmem:[%s411 + $0x8] sm:$0xff]
    %v792 = vmul.f32 %v788, %v790
    %v793 = vmul.f32 %v789, %v791
    %v794 = vadd.f32 %v782, %v792
    %v795 = vadd.f32 %v783, %v793
    %796 = vrot.lane.b32.xlu0 %v550, 97
    %v797 = vpop.permute.xlu0 %796
    %798 = vrot.lane.b32.xlu0 %v551, 97
    %v799 = vpop.permute.xlu0 %798
    %v800 = vsel %vm422, %v797, %v799
    %v801 = vsel %vm422, %v799, %v797
    %v802 = vld [vmem:[%s425] sm:$0xff]
    %v803 = vld [vmem:[%s425 + $0x8] sm:$0xff]
    %v804 = vmul.f32 %v800, %v802
    %v805 = vmul.f32 %v801, %v803
    %v806 = vadd.f32 %v794, %v804
    %v807 = vadd.f32 %v795, %v805
    %808 = vrot.lane.b32.xlu0 %v550, 96
    %v809 = vpop.permute.xlu0 %808
    %810 = vrot.lane.b32.xlu0 %v551, 96
    %v811 = vpop.permute.xlu0 %810
    %v812 = vsel %vm436, %v809, %v811
    %v813 = vsel %vm436, %v811, %v809
    %v814 = vld [vmem:[%s439] sm:$0xff]
    %v815 = vld [vmem:[%s439 + $0x8] sm:$0xff]
    %v816 = vmul.f32 %v812, %v814
    %v817 = vmul.f32 %v813, %v815
    %v818 = vadd.f32 %v806, %v816
    %v819 = vadd.f32 %v807, %v817
    %820 = vrot.lane.b32.xlu0 %v550, 95
    %v821 = vpop.permute.xlu0 %820
    %822 = vrot.lane.b32.xlu0 %v551, 95
    %v823 = vpop.permute.xlu0 %822
    %v824 = vsel %vm450, %v821, %v823
    %v825 = vsel %vm450, %v823, %v821
    %v826 = vld [vmem:[%s453] sm:$0xff]
    %v827 = vld [vmem:[%s453 + $0x8] sm:$0xff]
    %v828 = vmul.f32 %v824, %v826
    %v829 = vmul.f32 %v825, %v827
    %v830 = vadd.f32 %v818, %v828
    %v831 = vadd.f32 %v819, %v829
    %832 = vrot.lane.b32.xlu0 %v550, 94
    %v833 = vpop.permute.xlu0 %832
    %834 = vrot.lane.b32.xlu0 %v551, 94
    %v835 = vpop.permute.xlu0 %834
    %v836 = vsel %vm464, %v833, %v835
    %v837 = vsel %vm464, %v835, %v833
    %v838 = vld [vmem:[%s467] sm:$0xff]
    %v839 = vld [vmem:[%s467 + $0x8] sm:$0xff]
    %v840 = vmul.f32 %v836, %v838
    %v841 = vmul.f32 %v837, %v839
    %v842 = vadd.f32 %v830, %v840
    %v843 = vadd.f32 %v831, %v841
    %s844 = scalar_lea.vmem [#allocation7], 16
    %845 = vst [vmem:[%s844] sm:$0xff] %v842
    %846 = vst [vmem:[%s844 + $0x8] sm:$0xff] %v843
    // Predicated region
    $region26: #{tpu_custom_call.1} parent=1 // pred_check
      _
    $region27: #{tpu_custom_call.1} parent=1 // pred_check_branch
      %848 = sbr.rel (0) target = $region29
    $region28: #{tpu_custom_call.1} parent=1 // pred_region
      %s850 = ssub.s32 512, 512
      %851 = vsyncadd [#allocation4], %s850
      %s852 = sshll.u32 [#allocation7], 4
      %s853 = int_to_ptr.vmem [resolvable:$true] %s852
      %858 = dma.vmem_to_hbm [thread:$0]  %s853, 512, %s4, [#allocation4], 256, 256, 16
    $region29: #{tpu_custom_call.1} parent=1 // pred_fallthru
      _
    // Predicated region
    $region30: #{tpu_custom_call.1} parent=1 // pred_check
      _
    $region31: #{tpu_custom_call.1} parent=1 // pred_check_branch
      %860 = sbr.rel (0) target = $region33
    $region32: #{tpu_custom_call.1} parent=1 // pred_region
      %861 = dma.done [#allocation4], 512
    $region33: #{tpu_custom_call.1} parent=1 // pred_fallthru
      _
    %862 = vsyncpa [#allocation3], 1
    %863 = vsyncpa [#allocation6], 1
    %864 = vsyncpa [#allocation4], 1

</llo_original>
